<compile_context>
chip_gen: v5e
topology: v5e:2x2
jax: 0.10.0
libtpu: 0.0.40
codegen_flags: <defaults>
</compile_context>

<pallas_src>
import functools

import jax
import jax.numpy as jnp
from jax import lax
from jax.experimental import pallas as pl
from jax.experimental.pallas import tpu as pltpu


def _round_up(x, m):
    return (x + m - 1) // m * m


# Explicit VMEM budget: <= 64 MiB physical on v7x (leaves headroom for the compiler),
# far below the 128 MiB physical on v5e/v6e.
_VMEM_LIMIT_BYTES = 48 * 1024 * 1024


def _vmem_bytes(shape, itemsize):
    """Rough VMEM footprint of a block: last two dims padded to (8, 128)."""
    padded = list(shape)
    padded[-1] = _round_up(padded[-1], 128)
    if len(padded) >= 2:
        padded[-2] = _round_up(padded[-2], 8)
    nbytes = itemsize
    for d in padded:
        nbytes *= d
    return nbytes


# ----------------------------- in-kernel direct conv ----------------------------- #

def _conv_rows(xv, w_ref, r0, rc, *, ow, kh, kw, stride):
    """f32 (rc*ow, tn) conv output for output rows [r0, r0+rc) of one image.

    xv:    (Hp, Wp, Cin) bf16 padded image, channels on lanes.
    w_ref: (KH*KW, Cin, tn) bf16 weight block.
    Direct conv = sum over KH*KW taps of a (rc*ow, Cin) @ (Cin, tn) MXU matmul; the tap
    "im2col" is just a static (strided) slice + layout-trivial reshape in VMEM.
    """
    cin = xv.shape[-1]
    acc = None
    for i in range(kh):
        for j in range(kw):
            h0 = i + r0 * stride
            xs = lax.slice(
                xv,
                (h0, j, 0),
                (h0 + (rc - 1) * stride + 1, j + (ow - 1) * stride + 1, cin),
                (stride, stride, 1))
            a = xs.reshape(rc * ow, cin)                       # (rc*ow, Cin)
            d = jnp.dot(a, w_ref[i * kw + j],
                        preferred_element_type=jnp.float32)    # (rc*ow, tn) f32
            acc = d if acc is None else acc + d
    return acc


# --------------------------------- Pallas kernels --------------------------------- #

def conv_stats_kernel(x_ref, w_ref, sum_ref, m2_ref, acc_ref, *,
                      oh, ow, kh, kw, stride, rows_per_chunk):
    """Per-(image, cout-tile) BN stat partials: channel sums + centred sum-of-squares."""
    xv = x_ref[0]                                   # (Hp, Wp, Cin) bf16
    tn = sum_ref.shape[-1]
    s = oh * ow

    # Phase 1: conv into the VMEM scratch (chunked over output rows) + channel sums.
    tsum = jnp.zeros((1, tn), jnp.float32)
    for r0 in range(0, oh, rows_per_chunk):
        rc = min(rows_per_chunk, oh - r0)
        blk = _conv_rows(xv, w_ref, r0, rc, ow=ow, kh=kh, kw=kw, stride=stride)
        acc_ref[r0 * ow:(r0 + rc) * ow, :] = blk
        tsum = tsum + jnp.sum(blk, axis=0, keepdims=True)

    # Phase 2: sum of squares centred on the per-tile mean (cancellation-robust);
    # cross-tile combine happens in XLA via the Chan parallel-variance formula.
    mean_t = tsum * (1.0 / s)
    m2 = jnp.zeros((1, tn), jnp.float32)
    for r0 in range(0, oh, rows_per_chunk):
        rc = min(rows_per_chunk, oh - r0)
        d = acc_ref[r0 * ow:(r0 + rc) * ow, :] - mean_t
        m2 = m2 + jnp.sum(d * d, axis=0, keepdims=True)

    # Broadcast over a full (8, tn) sublane block -> plain unmasked vst; row 0 is used.
    sum_ref[...] = jnp.broadcast_to(tsum, sum_ref.shape)
    m2_ref[...] = jnp.broadcast_to(m2, m2_ref.shape)


def conv_bn_relu_kernel(x_ref, w_ref, scale_ref, shift_ref, o_ref, *,
                        oh, ow, kh, kw, stride, rows_per_chunk, has_relu):
    """Recompute conv, apply y*scale+shift (+ReLU), write channels-major output."""
    xv = x_ref[0]                                   # (Hp, Wp, Cin) bf16
    c_keep = o_ref.shape[1]                         # valid channels of this cout tile
    scale = scale_ref[...]
    shift = shift_ref[...]
    for r0 in range(0, oh, rows_per_chunk):         # strip-mine: bounded vreg pressure
        rc = min(rows_per_chunk, oh - r0)
        blk = _conv_rows(xv, w_ref, r0, rc, ow=ow, kh=kh, kw=kw, stride=stride)
        z = blk * scale + shift
        if has_relu:
            z = jnp.maximum(z, 0.0)
        # Transpose 128-lane groups only where valid channels exist (skips the padded
        # lane groups entirely for small cout), then store channels-major.
        for c0 in range(0, c_keep, 128):
            cw = min(128, c_keep - c0)
            zt = z[:, c0:c0 + 128].T                # (128, rc*ow) XLU transpose
            o_ref[0, c0:c0 + cw, r0 * ow:(r0 + rc) * ow] = \
                zt[:cw, :].astype(o_ref.dtype)


# ---------------------------------- JAX wrapper ----------------------------------- #

def conv_bn_relu_forward(x, weight, bias, gamma, beta, *, stride, padding,
                         has_bn=True, has_relu=True, eps=1e-5):
    n, cin, h, w = x.shape
    cout, _, kh, kw = weight.shape
    oh = (h + 2 * padding - kh) // stride + 1
    ow = (w + 2 * padding - kw) // stride + 1
    s = oh * ow
    hp, wp = h + 2 * padding, w + 2 * padding

    # cout tiling: 256-wide output tiles feed the full 2x256^2 MXU on v6e/v7x when cout
    # is large; 128-wide otherwise (matches v5e and avoids padding waste for small cout).
    tn = 256 if cout > 128 else 128
    cp = _round_up(cout, tn)
    nj = cp // tn
    c8 = _round_up(cout, 8)
    c_blk = c8 if nj == 1 else tn           # output channels written per pass-2 block
    s8 = _round_up(s, 8)

    # Output-row chunk so the live f32 working block stays ~<=128 KiB of vregs.
    pix_budget = max(8, (128 * 1024) // (4 * tn))
    rows_per_chunk = max(1, min(oh, pix_budget // max(1, ow)))

    # Explicit VMEM budgeting (double-buffered blocks + scratch + live working chunk).
    est = (2 * _vmem_bytes((1, hp, wp, cin), 2)
           + 2 * _vmem_bytes((kh * kw, cin, tn), 2)
           + _vmem_bytes((s8, tn), 4)
           + 4 * _vmem_bytes((8, tn), 4)
           + 2 * _vmem_bytes((1, c_blk, s), 4)
           + 6 * rows_per_chunk * ow * tn * 4)
    assert est <= _VMEM_LIMIT_BYTES, (
        f"tile selection needs ~{est} B VMEM > {_VMEM_LIMIT_BYTES} B budget")

    # --- XLA-side prep: one 1x-traffic transpose of x, no KH*KW im2col blowup -------
    xp = jnp.pad(x, ((0, 0), (0, 0), (padding, padding), (padding, padding)))
    x_nhwc = jnp.transpose(xp, (0, 2, 3, 1)).astype(jnp.bfloat16)   # (N, Hp, Wp, Cin)

    # weight -> (KH*KW, Cin, Cp) bf16 (cout zero-padded to the tile multiple)
    w_k = jnp.transpose(weight, (2, 3, 1, 0)).reshape(kh * kw, cin, cout)
    w_k = jnp.pad(w_k, ((0, 0), (0, 0), (0, cp - cout))).astype(jnp.bfloat16)

    gamma_p = jnp.pad(gamma.astype(jnp.float32), (0, cp - cout))
    beta_p = jnp.pad(beta.astype(jnp.float32), (0, cp - cout))
    bias_p = jnp.pad(bias.astype(jnp.float32), (0, cp - cout))

    x_spec = pl.BlockSpec((1, hp, wp, cin), lambda ni, ji: (ni, 0, 0, 0))
    w_spec = pl.BlockSpec((kh * kw, cin, tn), lambda ni, ji: (0, 0, ji))
    cparams = pltpu.CompilerParams(
        dimension_semantics=("parallel", "parallel"),
        vmem_limit_bytes=_VMEM_LIMIT_BYTES)

    # ---- pass 1: BN batch-stat partials (skipped entirely when has_bn=False) -------
    if has_bn:
        sum_part, m2_part = pl.pallas_call(
            functools.partial(conv_stats_kernel, oh=oh, ow=ow, kh=kh, kw=kw,
                              stride=stride, rows_per_chunk=rows_per_chunk),
            out_shape=(jax.ShapeDtypeStruct((n * 8, cp), jnp.float32),
                       jax.ShapeDtypeStruct((n * 8, cp), jnp.float32)),
            grid=(n, nj),
            in_specs=[x_spec, w_spec],
            out_specs=(pl.BlockSpec((8, tn), lambda ni, ji: (ni, ji)),
                       pl.BlockSpec((8, tn), lambda ni, ji: (ni, ji))),
            scratch_shapes=[pltpu.VMEM((s8, tn), jnp.float32)],
            compiler_params=cparams,
        )(x_nhwc, w_k)

        # Chan parallel-variance combine of per-image partials (tiny XLA glue).
        cnt_t = float(s)
        cnt_all = float(n * s)
        sums = sum_part.reshape(n, 8, cp)[:, 0, :]          # (n, cp)
        m2s = m2_part.reshape(n, 8, cp)[:, 0, :]            # (n, cp)
        mean_img = sums / cnt_t
        mean = jnp.sum(sums, axis=0) / cnt_all
        m2_between = jnp.sum(cnt_t * (mean_img - mean[None, :]) ** 2, axis=0)
        var = jnp.maximum((jnp.sum(m2s, axis=0) + m2_between) / cnt_all, 0.0)
        scale = gamma_p * lax.rsqrt(var + eps)
        # conv bias cancels exactly against the batch-mean subtraction -> never added
        shift = beta_p - mean * scale
    else:
        scale = jnp.ones((cp,), jnp.float32)
        shift = bias_p
    scale = scale.reshape(1, cp)
    shift = shift.reshape(1, cp)

    # ---- pass 2: recompute conv (cheaper than a y HBM round trip), affine+ReLU,
    #              write channels-major (N, C, OH*OW) directly (lane-dense stores) ----
    out_ncs = pl.pallas_call(
        functools.partial(conv_bn_relu_kernel, oh=oh, ow=ow, kh=kh, kw=kw,
                          stride=stride, rows_per_chunk=rows_per_chunk,
                          has_relu=has_relu),
        out_shape=jax.ShapeDtypeStruct((n, nj * c_blk, s), x.dtype),
        grid=(n, nj),
        in_specs=[x_spec, w_spec,
                  pl.BlockSpec((1, tn), lambda ni, ji: (0, ji)),
                  pl.BlockSpec((1, tn), lambda ni, ji: (0, ji))],
        out_specs=pl.BlockSpec((1, c_blk, s), lambda ni, ji: (ni, ji, 0)),
        compiler_params=cparams,
    )(x_nhwc, w_k, scale, shift)

    # Slice is a no-op when cout == nj*c_blk (e.g. cout % 8 == 0 with a single cout
    # tile, as in the toy case); the reshape is contiguous (no XLA transpose pass).
    return out_ncs[:, :cout, :].reshape(n, cout, oh, ow)


# ------------------------------ pure-JAX reference -------------------------------- #

def reference_forward(x, weight, bias, gamma, beta, *, stride, padding,
                      has_bn=True, has_relu=True, eps=1e-5):
    y = lax.conv_general_dilated(
        x, weight, window_strides=(stride, stride),
        padding=[(padding, padding), (padding, padding)],
        dimension_numbers=("NCHW", "OIHW", "NCHW"),
    ) + bias[None, :, None, None]
    if has_bn:
        mean = y.mean(axis=(0, 2, 3), keepdims=True)
        var = y.var(axis=(0, 2, 3), keepdims=True)  # biased, matches train-mode BN
        y = (y - mean) * lax.rsqrt(var + eps) * gamma[None, :, None, None] \
            + beta[None, :, None, None]
    if has_relu:
        y = jnp.maximum(y, 0.0)
    return y


# -------------------------------------- main --------------------------------------- #

if __name__ == "__main__":
    # conv_bn_relu(in_planes=4, out_planes=8, kernel_size=3, stride=1, padding=1)
    N, Cin, H, W = 2, 4, 16, 16
    Cout, K, stride, padding = 8, 3, 1, 1

    key = jax.random.PRNGKey(0)
    kx, kw_, kb = jax.random.split(key, 3)

    x = jax.random.normal(kx, (N, Cin, H, W), dtype=jnp.float32)
    weight = jax.random.normal(kw_, (Cout, Cin, K, K), dtype=jnp.float32) * 0.1
    bias = jax.random.normal(kb, (Cout,), dtype=jnp.float32) * 0.1
    gamma = jnp.ones((Cout,), dtype=jnp.float32)   # BatchNorm2d default init
    beta = jnp.zeros((Cout,), dtype=jnp.float32)

    out = conv_bn_relu_forward(
        x, weight, bias, gamma, beta,
        stride=stride, padding=padding, has_bn=True, has_relu=True,
    )
    out = jax.block_until_ready(out)
    assert out.shape == (N, Cout, H, W), out.shape

    # Tight check against a reference whose conv inputs see the same bf16 rounding as
    # the kernel's MXU inputs (both sides accumulate in f32) -> isolates kernel logic.
    x_bf = x.astype(jnp.bfloat16).astype(jnp.float32)
    w_bf = weight.astype(jnp.bfloat16).astype(jnp.float32)
    ref_bf = reference_forward(
        x_bf, w_bf, bias, gamma, beta,
        stride=stride, padding=padding, has_bn=True, has_relu=True,
    )
    err_bf = float(jnp.max(jnp.abs(out - ref_bf)))
    assert err_bf < 1e-3, f"max abs error vs bf16-input reference {err_bf}"

    # Loose mixed-precision sanity check against the strict f32 reference.
    ref_f32 = reference_forward(
        x, weight, bias, gamma, beta,
        stride=stride, padding=padding, has_bn=True, has_relu=True,
    )
    err_f32 = float(jnp.max(jnp.abs(out - ref_f32)))
    assert err_f32 < 5e-2, f"max abs error vs f32 reference {err_f32}"

    # Exercise the has_bn=False path (conv + bias + ReLU only, pass 1 skipped).
    out_nobn = conv_bn_relu_forward(
        x, weight, bias, gamma, beta,
        stride=stride, padding=padding, has_bn=False, has_relu=True,
    )
    out_nobn = jax.block_until_ready(out_nobn)
    ref_nobn = reference_forward(
        x_bf, w_bf, bias, gamma, beta,
        stride=stride, padding=padding, has_bn=False, has_relu=True,
    )
    err_nobn = float(jnp.max(jnp.abs(out_nobn - ref_nobn)))
    assert err_nobn < 2e-3, f"max abs error (no-BN path) {err_nobn}"

    print("KERNEL_OK")
</pallas_src>

<mosaic_0001>
module attributes {stable_mosaic.version = 11 : i64} {
  func.func @conv_stats_kernel(%arg0: i32, %arg1: i32, %arg2: memref<1x18x18x4xbf16, #tpu.memory_space<vmem>>, %arg3: memref<9x4x128xbf16, #tpu.memory_space<vmem>>, %arg4: memref<8x128xf32, #tpu.memory_space<vmem>>, %arg5: memref<8x128xf32, #tpu.memory_space<vmem>>, %arg6: memref<256x128xf32, #tpu.memory_space<vmem>>) attributes {dimension_semantics = [#tpu.dimension_semantics<parallel>, #tpu.dimension_semantics<parallel>], iteration_bounds = array<i64: 2, 1>, scalar_prefetch = 0 : i64, scratch_operands = 1 : i64, tpu.core_type = #tpu.core_type<tc>, window_params = [{transform_indices = @transform_0, window_bounds = array<i64: 1, 18, 18, 4>}, {transform_indices = @transform_1, window_bounds = array<i64: 9, 4, 128>}, {transform_indices = @transform_2, window_bounds = array<i64: 8, 128>}, {transform_indices = @transform_3, window_bounds = array<i64: 8, 128>}]} {
    %c0 = arith.constant 0 : index
    %c0_0 = arith.constant 0 : index
    %c0_1 = arith.constant 0 : index
    %c0_2 = arith.constant 0 : index
    %0 = vector.load %arg2[%c0, %c0_0, %c0_1, %c0_2] : memref<1x18x18x4xbf16, #tpu.memory_space<vmem>>, vector<1x18x18x4xbf16>
    %1 = vector.shape_cast %0 : vector<1x18x18x4xbf16> to vector<18x18x4xbf16>
    %cst = arith.constant 0.000000e+00 : f32
    %2 = vector.broadcast %cst : f32 to vector<1x128xf32>
    %3 = vector.extract_strided_slice %1 {offsets = [0, 0, 0], sizes = [16, 16, 4], strides = [1, 1, 1]} : vector<18x18x4xbf16> to vector<16x16x4xbf16>
    %4 = vector.shape_cast %3 : vector<16x16x4xbf16> to vector<256x4xbf16>
    %c0_3 = arith.constant 0 : index
    %c0_4 = arith.constant 0 : index
    %c0_5 = arith.constant 0 : index
    %5 = vector.load %arg3[%c0_3, %c0_4, %c0_5] : memref<9x4x128xbf16, #tpu.memory_space<vmem>>, vector<1x4x128xbf16>
    %6 = vector.shape_cast %5 : vector<1x4x128xbf16> to vector<4x128xbf16>
    %cst_6 = arith.constant dense<0.000000e+00> : vector<256x128xf32>
    %7 = tpu.matmul %4, %6, %cst_6 {dimension_numbers = #tpu.dot_dimension_numbers<[1], [0], [0], [1], [0, 0, 1, 1], [], []>} : vector<256x4xbf16>, vector<4x128xbf16>, vector<256x128xf32> -> vector<256x128xf32>
    %8 = vector.extract_strided_slice %1 {offsets = [0, 1, 0], sizes = [16, 16, 4], strides = [1, 1, 1]} : vector<18x18x4xbf16> to vector<16x16x4xbf16>
    %9 = vector.shape_cast %8 : vector<16x16x4xbf16> to vector<256x4xbf16>
    %c1 = arith.constant 1 : index
    %c0_7 = arith.constant 0 : index
    %c0_8 = arith.constant 0 : index
    %10 = vector.load %arg3[%c1, %c0_7, %c0_8] : memref<9x4x128xbf16, #tpu.memory_space<vmem>>, vector<1x4x128xbf16>
    %11 = vector.shape_cast %10 : vector<1x4x128xbf16> to vector<4x128xbf16>
    %cst_9 = arith.constant dense<0.000000e+00> : vector<256x128xf32>
    %12 = tpu.matmul %9, %11, %cst_9 {dimension_numbers = #tpu.dot_dimension_numbers<[1], [0], [0], [1], [0, 0, 1, 1], [], []>} : vector<256x4xbf16>, vector<4x128xbf16>, vector<256x128xf32> -> vector<256x128xf32>
    %13 = arith.addf %7, %12 : vector<256x128xf32>
    %14 = vector.extract_strided_slice %1 {offsets = [0, 2, 0], sizes = [16, 16, 4], strides = [1, 1, 1]} : vector<18x18x4xbf16> to vector<16x16x4xbf16>
    %15 = vector.shape_cast %14 : vector<16x16x4xbf16> to vector<256x4xbf16>
    %c2 = arith.constant 2 : index
    %c0_10 = arith.constant 0 : index
    %c0_11 = arith.constant 0 : index
    %16 = vector.load %arg3[%c2, %c0_10, %c0_11] : memref<9x4x128xbf16, #tpu.memory_space<vmem>>, vector<1x4x128xbf16>
    %17 = vector.shape_cast %16 : vector<1x4x128xbf16> to vector<4x128xbf16>
    %cst_12 = arith.constant dense<0.000000e+00> : vector<256x128xf32>
    %18 = tpu.matmul %15, %17, %cst_12 {dimension_numbers = #tpu.dot_dimension_numbers<[1], [0], [0], [1], [0, 0, 1, 1], [], []>} : vector<256x4xbf16>, vector<4x128xbf16>, vector<256x128xf32> -> vector<256x128xf32>
    %19 = arith.addf %13, %18 : vector<256x128xf32>
    %20 = vector.extract_strided_slice %1 {offsets = [1, 0, 0], sizes = [16, 16, 4], strides = [1, 1, 1]} : vector<18x18x4xbf16> to vector<16x16x4xbf16>
    %21 = vector.shape_cast %20 : vector<16x16x4xbf16> to vector<256x4xbf16>
    %c3 = arith.constant 3 : index
    %c0_13 = arith.constant 0 : index
    %c0_14 = arith.constant 0 : index
    %22 = vector.load %arg3[%c3, %c0_13, %c0_14] : memref<9x4x128xbf16, #tpu.memory_space<vmem>>, vector<1x4x128xbf16>
    %23 = vector.shape_cast %22 : vector<1x4x128xbf16> to vector<4x128xbf16>
    %cst_15 = arith.constant dense<0.000000e+00> : vector<256x128xf32>
    %24 = tpu.matmul %21, %23, %cst_15 {dimension_numbers = #tpu.dot_dimension_numbers<[1], [0], [0], [1], [0, 0, 1, 1], [], []>} : vector<256x4xbf16>, vector<4x128xbf16>, vector<256x128xf32> -> vector<256x128xf32>
    %25 = arith.addf %19, %24 : vector<256x128xf32>
    %26 = vector.extract_strided_slice %1 {offsets = [1, 1, 0], sizes = [16, 16, 4], strides = [1, 1, 1]} : vector<18x18x4xbf16> to vector<16x16x4xbf16>
    %27 = vector.shape_cast %26 : vector<16x16x4xbf16> to vector<256x4xbf16>
    %c4 = arith.constant 4 : index
    %c0_16 = arith.constant 0 : index
    %c0_17 = arith.constant 0 : index
    %28 = vector.load %arg3[%c4, %c0_16, %c0_17] : memref<9x4x128xbf16, #tpu.memory_space<vmem>>, vector<1x4x128xbf16>
    %29 = vector.shape_cast %28 : vector<1x4x128xbf16> to vector<4x128xbf16>
    %cst_18 = arith.constant dense<0.000000e+00> : vector<256x128xf32>
    %30 = tpu.matmul %27, %29, %cst_18 {dimension_numbers = #tpu.dot_dimension_numbers<[1], [0], [0], [1], [0, 0, 1, 1], [], []>} : vector<256x4xbf16>, vector<4x128xbf16>, vector<256x128xf32> -> vector<256x128xf32>
    %31 = arith.addf %25, %30 : vector<256x128xf32>
    %32 = vector.extract_strided_slice %1 {offsets = [1, 2, 0], sizes = [16, 16, 4], strides = [1, 1, 1]} : vector<18x18x4xbf16> to vector<16x16x4xbf16>
    %33 = vector.shape_cast %32 : vector<16x16x4xbf16> to vector<256x4xbf16>
    %c5 = arith.constant 5 : index
    %c0_19 = arith.constant 0 : index
    %c0_20 = arith.constant 0 : index
    %34 = vector.load %arg3[%c5, %c0_19, %c0_20] : memref<9x4x128xbf16, #tpu.memory_space<vmem>>, vector<1x4x128xbf16>
    %35 = vector.shape_cast %34 : vector<1x4x128xbf16> to vector<4x128xbf16>
    %cst_21 = arith.constant dense<0.000000e+00> : vector<256x128xf32>
    %36 = tpu.matmul %33, %35, %cst_21 {dimension_numbers = #tpu.dot_dimension_numbers<[1], [0], [0], [1], [0, 0, 1, 1], [], []>} : vector<256x4xbf16>, vector<4x128xbf16>, vector<256x128xf32> -> vector<256x128xf32>
    %37 = arith.addf %31, %36 : vector<256x128xf32>
    %38 = vector.extract_strided_slice %1 {offsets = [2, 0, 0], sizes = [16, 16, 4], strides = [1, 1, 1]} : vector<18x18x4xbf16> to vector<16x16x4xbf16>
    %39 = vector.shape_cast %38 : vector<16x16x4xbf16> to vector<256x4xbf16>
    %c6 = arith.constant 6 : index
    %c0_22 = arith.constant 0 : index
    %c0_23 = arith.constant 0 : index
    %40 = vector.load %arg3[%c6, %c0_22, %c0_23] : memref<9x4x128xbf16, #tpu.memory_space<vmem>>, vector<1x4x128xbf16>
    %41 = vector.shape_cast %40 : vector<1x4x128xbf16> to vector<4x128xbf16>
    %cst_24 = arith.constant dense<0.000000e+00> : vector<256x128xf32>
    %42 = tpu.matmul %39, %41, %cst_24 {dimension_numbers = #tpu.dot_dimension_numbers<[1], [0], [0], [1], [0, 0, 1, 1], [], []>} : vector<256x4xbf16>, vector<4x128xbf16>, vector<256x128xf32> -> vector<256x128xf32>
    %43 = arith.addf %37, %42 : vector<256x128xf32>
    %44 = vector.extract_strided_slice %1 {offsets = [2, 1, 0], sizes = [16, 16, 4], strides = [1, 1, 1]} : vector<18x18x4xbf16> to vector<16x16x4xbf16>
    %45 = vector.shape_cast %44 : vector<16x16x4xbf16> to vector<256x4xbf16>
    %c7 = arith.constant 7 : index
    %c0_25 = arith.constant 0 : index
    %c0_26 = arith.constant 0 : index
    %46 = vector.load %arg3[%c7, %c0_25, %c0_26] : memref<9x4x128xbf16, #tpu.memory_space<vmem>>, vector<1x4x128xbf16>
    %47 = vector.shape_cast %46 : vector<1x4x128xbf16> to vector<4x128xbf16>
    %cst_27 = arith.constant dense<0.000000e+00> : vector<256x128xf32>
    %48 = tpu.matmul %45, %47, %cst_27 {dimension_numbers = #tpu.dot_dimension_numbers<[1], [0], [0], [1], [0, 0, 1, 1], [], []>} : vector<256x4xbf16>, vector<4x128xbf16>, vector<256x128xf32> -> vector<256x128xf32>
    %49 = arith.addf %43, %48 : vector<256x128xf32>
    %50 = vector.extract_strided_slice %1 {offsets = [2, 2, 0], sizes = [16, 16, 4], strides = [1, 1, 1]} : vector<18x18x4xbf16> to vector<16x16x4xbf16>
    %51 = vector.shape_cast %50 : vector<16x16x4xbf16> to vector<256x4xbf16>
    %c8 = arith.constant 8 : index
    %c0_28 = arith.constant 0 : index
    %c0_29 = arith.constant 0 : index
    %52 = vector.load %arg3[%c8, %c0_28, %c0_29] : memref<9x4x128xbf16, #tpu.memory_space<vmem>>, vector<1x4x128xbf16>
    %53 = vector.shape_cast %52 : vector<1x4x128xbf16> to vector<4x128xbf16>
    %cst_30 = arith.constant dense<0.000000e+00> : vector<256x128xf32>
    %54 = tpu.matmul %51, %53, %cst_30 {dimension_numbers = #tpu.dot_dimension_numbers<[1], [0], [0], [1], [0, 0, 1, 1], [], []>} : vector<256x4xbf16>, vector<4x128xbf16>, vector<256x128xf32> -> vector<256x128xf32>
    %55 = arith.addf %49, %54 : vector<256x128xf32>
    %c0_31 = arith.constant 0 : index
    %c0_32 = arith.constant 0 : index
    %56 = vector.load %arg6[%c0_31, %c0_32] : memref<256x128xf32, #tpu.memory_space<vmem>>, vector<256x128xf32>
    tpu.vector_store %arg6[%c0_31, %c0_32], %55 {strides = array<i32>} : memref<256x128xf32, #tpu.memory_space<vmem>>, vector<256x128xf32>,
    %cst_33 = arith.constant dense<0.000000e+00> : vector<128xf32>
    %57 = vector.multi_reduction <add>, %55, %cst_33 [0] : vector<256x128xf32> to vector<128xf32>
    %58 = vector.shape_cast %57 : vector<128xf32> to vector<1x128xf32>
    %59 = arith.addf %2, %58 : vector<1x128xf32>
    %cst_34 = arith.constant 3.906250e-03 : f32
    %60 = vector.broadcast %cst_34 : f32 to vector<1x128xf32>
    %61 = arith.mulf %59, %60 : vector<1x128xf32>
    %cst_35 = arith.constant 0.000000e+00 : f32
    %62 = vector.broadcast %cst_35 : f32 to vector<1x128xf32>
    %c0_36 = arith.constant 0 : index
    %c0_37 = arith.constant 0 : index
    %63 = vector.load %arg6[%c0_36, %c0_37] : memref<256x128xf32, #tpu.memory_space<vmem>>, vector<256x128xf32>
    %64 = vector.broadcast %61 : vector<1x128xf32> to vector<256x128xf32>
    %65 = arith.subf %63, %64 : vector<256x128xf32>
    %66 = arith.mulf %65, %65 : vector<256x128xf32>
    %cst_38 = arith.constant dense<0.000000e+00> : vector<128xf32>
    %67 = vector.multi_reduction <add>, %66, %cst_38 [0] : vector<256x128xf32> to vector<128xf32>
    %68 = vector.shape_cast %67 : vector<128xf32> to vector<1x128xf32>
    %69 = arith.addf %62, %68 : vector<1x128xf32>
    %70 = vector.shape_cast %59 : vector<1x128xf32> to vector<1x128xf32>
    %71 = vector.broadcast %70 : vector<1x128xf32> to vector<8x128xf32>
    %c0_39 = arith.constant 0 : index
    %c0_40 = arith.constant 0 : index
    %72 = vector.load %arg4[%c0_39, %c0_40] : memref<8x128xf32, #tpu.memory_space<vmem>>, vector<8x128xf32>
    tpu.vector_store %arg4[%c0_39, %c0_40], %71 {strides = array<i32>} : memref<8x128xf32, #tpu.memory_space<vmem>>, vector<8x128xf32>,
    %73 = vector.shape_cast %69 : vector<1x128xf32> to vector<1x128xf32>
    %74 = vector.broadcast %73 : vector<1x128xf32> to vector<8x128xf32>
    %c0_41 = arith.constant 0 : index
    %c0_42 = arith.constant 0 : index
    %75 = vector.load %arg5[%c0_41, %c0_42] : memref<8x128xf32, #tpu.memory_space<vmem>>, vector<8x128xf32>
    tpu.vector_store %arg5[%c0_41, %c0_42], %74 {strides = array<i32>} : memref<8x128xf32, #tpu.memory_space<vmem>>, vector<8x128xf32>,
    return
  }
  func.func @transform_0(%arg0: i32, %arg1: i32) -> (i32, i32, i32, i32) {
    %c0_i32 = arith.constant 0 : i32
    %c0_i32_0 = arith.constant 0 : i32
    %c0_i32_1 = arith.constant 0 : i32
    %c0_i32_2 = arith.constant 0 : i32
    return %arg0, %c0_i32, %c0_i32_0, %c0_i32_1 : i32, i32, i32, i32
  }
  func.func @transform_1(%arg0: i32, %arg1: i32) -> (i32, i32, i32) {
    %c0_i32 = arith.constant 0 : i32
    %c0_i32_0 = arith.constant 0 : i32
    %c0_i32_1 = arith.constant 0 : i32
    return %c0_i32, %c0_i32_0, %arg1 : i32, i32, i32
  }
  func.func @transform_2(%arg0: i32, %arg1: i32) -> (i32, i32) {
    %c0_i32 = arith.constant 0 : i32
    return %arg0, %arg1 : i32, i32
  }
  func.func @transform_3(%arg0: i32, %arg1: i32) -> (i32, i32) {
    %c0_i32 = arith.constant 0 : i32
    return %arg0, %arg1 : i32, i32
  }
}

</mosaic_0001>

<llo_original>
// kernel: tpu_custom_call.1
$region0: #{tpu_custom_call.1}
  #allocation0 [shape = 'u32[]', space=smem, size = 0x4, offset = 0x4, fixed_abs, tag = 'smem constant byte address 0x4 - core index']
  #allocation1 [shape = 'u32[72,128]{1,0:T(1,128)}', space=vmem, size = 0x9000, scoped, tag = 'internal scratch']
  #allocation2 [shape = 'f32[256,128]{1,0:T(8,128)}', space=vmem, size = 0x20000, scoped, tag = 'scratch operand']
  %s0 = inlined_call_operand.vmem [shape: bf16[2,18,18,4], index: 0, kind: input, shape index: {}]
  %s1 = inlined_call_operand.vmem [shape: bf16[9,4,128], index: 1, kind: input, shape index: {}]
  %s2 = inlined_call_operand.hbm [shape: f32[16,128], index: 2, kind: output, shape index: {0}]
  %s3 = inlined_call_operand.hbm [shape: f32[16,128], index: 3, kind: output, shape index: {1}]
  %4 = xla_tuple %s2, %s3
  %s5 = sld [smem:[#allocation0]]
  $region49: #{tpu_custom_call.1} parent=0
    _
  %s7 = ssub.s32 1, %s5
  %s8 = scalar_select 0, %s7, %s5
  $region1: #{tpu_custom_call.1} parent=0
    #allocation3 [shape = 'u8[8192]{0}', space=vmem, size = 0x2000, scoped, tag = 'output window, operand 0']
    #allocation4 [shape = 's32[2]{0}', space=sflag, size = 0x8, scoped, tag = 'scoped memory for tpu_custom_call.1']
    #allocation5 [shape = 'u8[8192]{0}', space=vmem, size = 0x2000, scoped, tag = 'output window, operand 1']
    #allocation6 [shape = 's32[2]{0}', space=sflag, size = 0x8, scoped, tag = 'scoped memory for tpu_custom_call.1']
    %9 = vsyncpa [#allocation4], 0
    %s10 = scalar_lea.sflag [#allocation4], 1
    %11 = vsyncpa %s10, 0
    %12 = vsyncpa [#allocation6], 0
    %s13 = scalar_lea.sflag [#allocation6], 1
    %14 = vsyncpa %s13, 0
    loop: start=0, step=1, limit=4
    $region2: #{tpu_custom_call.1} parent=1 // loop_pre_header
      _
    $region3: #{tpu_custom_call.1} parent=1 // loop_header
      %s16 = sphi 0, %s20
      %p17 = scmp.ge.s32.totalorder %s16, 4
      %s23 = sphi 0, %s35
      %s24 = sphi 0, %s31
      %s25 = sphi 0, %s23
      %s26 = sphi 0, %s24
      %s27 = sphi 0, %s25
      %s28 = sphi 0, %s26
      %s38 = sphi 0, %s40
      %s41 = sphi 0, %s38
      %s42 = sphi 0, %s41
      %s58 = sphi 0, %s42
      %s64 = sphi 0, %s66
      %s67 = sphi 0, %s64
      %s68 = sphi 0, %s67
      %s84 = sphi 0, %s68
      %s92 = sphi 0, %s94
      %s95 = sphi 0, %s92
      %s96 = sphi 0, %s95
      %s112 = sphi 0, %s96
      %s120 = sphi 0, %s122
      %s123 = sphi 0, %s120
      %s124 = sphi 0, %s123
      %s140 = sphi 0, %s124
    $region4: #{tpu_custom_call.1} parent=1 // loop_header_branch
      %19 = sbr.rel (%p17) target = $region8
    $region5: #{tpu_custom_call.1} parent=1 // loop_body
      %s21 = ssub.s32 %s16, 1
      %s22 = ssub.s32 %s16, 2
      %s29 = sadd.s32 1, %s24
      %p30 = scmp.ge.s32.totalorder %s29, 1
      %s31 = scalar_select %p30, 0, %s29
      %s32 = sadd.s32 1, %s23
      %s33 = scalar_select %p30, %s32, %s23
      %p34 = scmp.ge.s32.totalorder %s33, 2
      %s35 = scalar_select %p34, 0, %s33
      %s36 = ssub.s32 %s23, %s35
      %p37 = scmp.eq.s32.totalorder %s36, 0
      %s39 = sadd.s32 %s38, 1
      %s40 = scalar_select %p37, %s38, %s39
      %p43 = pneg %p37
      %p44 = scmp.eq.s32.totalorder %s16, 1
      %p45 = por %p43, %p44
      %p46 = scmp.ne.s32.totalorder %s38, %s41
      %p47 = scmp.eq.s32.totalorder %s16, 0
      %p48 = por %p46, %p47
      %p49 = scmp.ne.s32.totalorder %s38, %s41
      %p50 = scmp.eq.s32.totalorder %s21, 1
      %p51 = por %p49, %p50
      %p52 = scmp.ne.s32.totalorder %s41, %s42
      %p53 = scmp.eq.s32.totalorder %s21, 0
      %p54 = por %p52, %p53
      %p55 = scmp.ne.s32.totalorder %s41, %s42
      %p56 = scmp.eq.s32.totalorder %s22, 1
      %p57 = por %p55, %p56
      %p59 = scmp.ne.s32.totalorder %s42, %s58
      %p60 = scmp.eq.s32.totalorder %s22, 0
      %p61 = por %p59, %p60
      %s62 = ssub.s32 %s24, %s31
      %p63 = scmp.eq.s32.totalorder %s62, 0
      %s65 = sadd.s32 %s64, 1
      %s66 = scalar_select %p63, %s64, %s65
      %p69 = pneg %p63
      %p70 = scmp.eq.s32.totalorder %s16, 1
      %p71 = por %p69, %p70
      %p72 = scmp.ne.s32.totalorder %s64, %s67
      %p73 = scmp.eq.s32.totalorder %s16, 0
      %p74 = por %p72, %p73
      %p75 = scmp.ne.s32.totalorder %s64, %s67
      %p76 = scmp.eq.s32.totalorder %s21, 1
      %p77 = por %p75, %p76
      %p78 = scmp.ne.s32.totalorder %s67, %s68
      %p79 = scmp.eq.s32.totalorder %s21, 0
      %p80 = por %p78, %p79
      %p81 = scmp.ne.s32.totalorder %s67, %s68
      %p82 = scmp.eq.s32.totalorder %s22, 1
      %p83 = por %p81, %p82
      %p85 = scmp.ne.s32.totalorder %s68, %s84
      %p86 = scmp.eq.s32.totalorder %s22, 0
      %p87 = por %p85, %p86
      %s88 = ssub.s32 %s23, %s35
      %s89 = ssub.s32 %s24, %s31
      %s90 = sor.u32 %s88, %s89
      %p91 = scmp.eq.s32.totalorder %s90, 0
      %s93 = sadd.s32 %s92, 1
      %s94 = scalar_select %p91, %s92, %s93
      %p97 = pneg %p91
      %p98 = scmp.eq.s32.totalorder %s16, 1
      %p99 = por %p97, %p98
      %p100 = scmp.ne.s32.totalorder %s92, %s95
      %p101 = scmp.eq.s32.totalorder %s16, 0
      %p102 = por %p100, %p101
      %p103 = scmp.ne.s32.totalorder %s92, %s95
      %p104 = scmp.eq.s32.totalorder %s21, 1
      %p105 = por %p103, %p104
      %p106 = scmp.ne.s32.totalorder %s95, %s96
      %p107 = scmp.eq.s32.totalorder %s21, 0
      %p108 = por %p106, %p107
      %p109 = scmp.ne.s32.totalorder %s95, %s96
      %p110 = scmp.eq.s32.totalorder %s22, 1
      %p111 = por %p109, %p110
      %p113 = scmp.ne.s32.totalorder %s96, %s112
      %p114 = scmp.eq.s32.totalorder %s22, 0
      %p115 = por %p113, %p114
      %s116 = ssub.s32 %s23, %s35
      %s117 = ssub.s32 %s24, %s31
      %s118 = sor.u32 %s116, %s117
      %p119 = scmp.eq.s32.totalorder %s118, 0
      %s121 = sadd.s32 %s120, 1
      %s122 = scalar_select %p119, %s120, %s121
      %p125 = pneg %p119
      %p126 = scmp.eq.s32.totalorder %s16, 1
      %p127 = por %p125, %p126
      %p128 = scmp.ne.s32.totalorder %s120, %s123
      %p129 = scmp.eq.s32.totalorder %s16, 0
      %p130 = por %p128, %p129
      %p131 = scmp.ne.s32.totalorder %s120, %s123
      %p132 = scmp.eq.s32.totalorder %s21, 1
      %p133 = por %p131, %p132
      %p134 = scmp.ne.s32.totalorder %s123, %s124
      %p135 = scmp.eq.s32.totalorder %s21, 0
      %p136 = por %p134, %p135
      %p137 = scmp.ne.s32.totalorder %s123, %s124
      %p138 = scmp.eq.s32.totalorder %s22, 1
      %p139 = por %p137, %p138
      %p141 = scmp.ne.s32.totalorder %s124, %s140
      %p142 = scmp.eq.s32.totalorder %s22, 0
      %p143 = por %p141, %p142
      %p144 = scmp.le.s32.totalorder 1, %s16
      %p145 = scmp.lt.s32.totalorder %s16, 3
      %p146 = pnand %p144, %p145
      %p147 = pneg %p146
      // Predicated region
      $region9: #{tpu_custom_call.1} parent=5 // pred_check
        _
      $region10: #{tpu_custom_call.1} parent=5 // pred_check_branch
        %149 = sbr.rel (%p146) target = $region12
      $region11: #{tpu_custom_call.1} parent=5 // pred_region
        %s150 = ssub.s32 %s16, 1
        // Predicated region
        $region13: #{tpu_custom_call.1} parent=11 // pred_check
          %p151 = pneg %p80
        $region14: #{tpu_custom_call.1} parent=11 // pred_check_branch
          %153 = sbr.rel (%p151) target = $region16
        $region15: #{tpu_custom_call.1} parent=11 // pred_region
          %p154 = scmp.lt.s32.totalorder %s26, 0
          %s155 = scalar_select %p154, %s26, 0
          %s156 = smul.addr %s155, 2
          %s157 = scalar_lea.vmem %s1, %s156
        $region16: #{tpu_custom_call.1} parent=11 // pred_fallthru
          _
      $region12: #{tpu_custom_call.1} parent=5 // pred_fallthru
        _
      %p158 = scmp.lt.s32.totalorder %s16, 2
      // Predicated region
      $region17: #{tpu_custom_call.1} parent=5 // pred_check
        %p159 = pneg %p158
      $region18: #{tpu_custom_call.1} parent=5 // pred_check_branch
        %161 = sbr.rel (%p159) target = $region20
      $region19: #{tpu_custom_call.1} parent=5 // pred_region
        // Predicated region
        $region21: #{tpu_custom_call.1} parent=19 // pred_check
          %p162 = pneg %p48
        $region22: #{tpu_custom_call.1} parent=19 // pred_check_branch
          %164 = sbr.rel (%p162) target = $region24
        $region23: #{tpu_custom_call.1} parent=19 // pred_region
          %p165 = scmp.lt.s32.totalorder %s23, 1
          %s166 = scalar_select %p165, %s23, 1
          %s167 = smul.addr %s166, 54
          %s168 = smul.addr %s167, 4
          %s169 = scalar_lea.vmem %s0, %s168
        $region24: #{tpu_custom_call.1} parent=19 // pred_fallthru
          _
      $region20: #{tpu_custom_call.1} parent=5 // pred_fallthru
        _
      %p170 = scmp.le.s32.totalorder 1, %s16
      %p171 = scmp.lt.s32.totalorder %s16, 3
      %p172 = pnand %p170, %p171
      %p173 = pneg %p172
      // Predicated region
      $region25: #{tpu_custom_call.1} parent=5 // pred_check
        _
      $region26: #{tpu_custom_call.1} parent=5 // pred_check_branch
        %175 = sbr.rel (%p172) target = $region28
      $region27: #{tpu_custom_call.1} parent=5 // pred_region
        %s176 = ssub.s32 %s16, 1
        %p177 = scmp.lt.s32.totalorder %s25, 1
        %s178 = scalar_select %p177, %s25, 1
        %s179 = smul.addr %s178, 54
        %s180 = smul.addr %s179, 4
        %s181 = scalar_lea.vmem %s0, %s180
        %p182 = pneg %p54
        %p183 = pneg %p51
        %p184 = scmp.lt.s32.totalorder %s26, 0
        %s185 = scalar_select %p184, %s26, 0
        %s186 = smul.addr %s185, 2
        %s187 = scalar_lea.vmem %s1, %s186
        %p188 = pneg %p80
        %p189 = pneg %p77
        %p190 = pneg %p108
        %p191 = pneg %p105
        %s192 = sand.u32 %s95, 1
        %s193 = scalar_lea.sflag [#allocation4], %s192
        %s194 = sand.u32 %s95, 1
        %s195 = smul.addr %s194, 8
        %s196 = scalar_lea.vmem [#allocation3], %s195
        %p197 = pneg %p136
        %p198 = pneg %p133
        %s199 = sand.u32 %s123, 1
        %s200 = scalar_lea.sflag [#allocation6], %s199
        %s201 = sand.u32 %s123, 1
        %s202 = smul.addr %s201, 8
        %s203 = scalar_lea.vmem [#allocation5], %s202
        %p204 = scmp.lt.s32.totalorder %s25, 1
        %s205 = scalar_select %p204, %s25, 1
        %s206 = smul.addr %s205, 54
        %s207 = smul.addr %s206, 4
        %s208 = scalar_lea.vmem %s0, %s207
        %p209 = scmp.lt.s32.totalorder %s26, 0
        %s210 = scalar_select %p209, %s26, 0
        %s211 = smul.addr %s210, 2
        %s212 = scalar_lea.vmem %s1, %s211
        %v214 = vld [vmem:[%s208] sm:$0xf]
        %v215 = vld [vmem:[%s208 + $0x4] sm:$0xf]
        %v216 = vld [vmem:[%s208 + $0x8] sm:$0x1]
        %v217 = vld [vmem:[%s208 + $0xc] sm:$0xf]
        %v218 = vld [vmem:[%s208 + $0x10] sm:$0xf]
        %v219 = vld [vmem:[%s208 + $0x14] sm:$0x1]
        %v220 = vld [vmem:[%s208 + $0x18] sm:$0xf]
        %v221 = vld [vmem:[%s208 + $0x1c] sm:$0xf]
        %v222 = vld [vmem:[%s208 + $0x20] sm:$0x1]
        %v223 = vld [vmem:[%s208 + $0x24] sm:$0xf]
        %v224 = vld [vmem:[%s208 + $0x28] sm:$0xf]
        %v225 = vld [vmem:[%s208 + $0x2c] sm:$0x1]
        %v226 = vld [vmem:[%s208 + $0x30] sm:$0xf]
        %v227 = vld [vmem:[%s208 + $0x34] sm:$0xf]
        %v228 = vld [vmem:[%s208 + $0x38] sm:$0x1]
        %v229 = vld [vmem:[%s208 + $0x3c] sm:$0xf]
        %v230 = vld [vmem:[%s208 + $0x40] sm:$0xf]
        %v231 = vld [vmem:[%s208 + $0x44] sm:$0x1]
        %v232 = vld [vmem:[%s208 + $0x48] sm:$0xf]
        %v233 = vld [vmem:[%s208 + $0x4c] sm:$0xf]
        %v234 = vld [vmem:[%s208 + $0x50] sm:$0x1]
        %v235 = vld [vmem:[%s208 + $0x54] sm:$0xf]
        %v236 = vld [vmem:[%s208 + $0x58] sm:$0xf]
        %v237 = vld [vmem:[%s208 + $0x5c] sm:$0x1]
        %v238 = vld [vmem:[%s208 + $0x60] sm:$0xf]
        %v239 = vld [vmem:[%s208 + $0x64] sm:$0xf]
        %v240 = vld [vmem:[%s208 + $0x68] sm:$0x1]
        %v241 = vld [vmem:[%s208 + $0x6c] sm:$0xf]
        %v242 = vld [vmem:[%s208 + $0x70] sm:$0xf]
        %v243 = vld [vmem:[%s208 + $0x74] sm:$0x1]
        %v244 = vld [vmem:[%s208 + $0x78] sm:$0xf]
        %v245 = vld [vmem:[%s208 + $0x7c] sm:$0xf]
        %v246 = vld [vmem:[%s208 + $0x80] sm:$0x1]
        %v247 = vld [vmem:[%s208 + $0x84] sm:$0xf]
        %v248 = vld [vmem:[%s208 + $0x88] sm:$0xf]
        %v249 = vld [vmem:[%s208 + $0x8c] sm:$0x1]
        %v250 = vld [vmem:[%s208 + $0x90] sm:$0xf]
        %v251 = vld [vmem:[%s208 + $0x94] sm:$0xf]
        %v252 = vld [vmem:[%s208 + $0x98] sm:$0x1]
        %v253 = vld [vmem:[%s208 + $0x9c] sm:$0xf]
        %v254 = vld [vmem:[%s208 + $0xa0] sm:$0xf]
        %v255 = vld [vmem:[%s208 + $0xa4] sm:$0x1]
        %v256 = vld [vmem:[%s208 + $0xa8] sm:$0xf]
        %v257 = vld [vmem:[%s208 + $0xac] sm:$0xf]
        %v258 = vld [vmem:[%s208 + $0xb0] sm:$0x1]
        %v259 = vld [vmem:[%s208 + $0xb4] sm:$0xf]
        %v260 = vld [vmem:[%s208 + $0xb8] sm:$0xf]
        %v261 = vld [vmem:[%s208 + $0xbc] sm:$0x1]
        %v262 = vld [vmem:[%s208 + $0xc0] sm:$0xf]
        %v263 = vld [vmem:[%s208 + $0xc4] sm:$0xf]
        %v264 = vld [vmem:[%s208 + $0xc8] sm:$0x1]
        %v265 = vld [vmem:[%s208 + $0xcc] sm:$0xf]
        %v266 = vld [vmem:[%s208 + $0xd0] sm:$0xf]
        %v267 = vld [vmem:[%s208 + $0xd4] sm:$0x1]
        %v268 = vld [vmem:[%s212] sm:$0x3]
        %vm269 = vsmask.f32 3328
        %vm270 = vsmask.f32 7440
        %vm271 = vmor %vm269, %vm270
        %v273 = vshrl.u32 %v214, 16
        %v275 = vrot.slane %v273, 4
        %v276 = vshll.u32 %v214, 16
        %v278 = vrot.slane %v276, 5
        %v279 = vor.u32 %v275, %v278
        %v280 = vrot.slane %v279, 4
        %v282 = vshll.u32 %v215, 16
        %v284 = vrot.slane %v282, 5
        %v285 = vsel %vm271, %v280, %v284
        %v286 = vshrl.u32 %v215, 16
        %v288 = vrot.slane %v286, 4
        %v289 = vor.u32 %v288, %v284
        %v290 = vrot.slane %v289, 4
        %v292 = vshll.u32 %v216, 16
        %v294 = vrot.slane %v292, 5
        %v295 = vsel %vm271, %v290, %v294
        %v297 = vshrl.u32 %v217, 16
        %v299 = vrot.slane %v297, 4
        %v300 = vshll.u32 %v217, 16
        %v302 = vrot.slane %v300, 5
        %v303 = vor.u32 %v299, %v302
        %v304 = vrot.slane %v303, 4
        %v306 = vshll.u32 %v218, 16
        %v308 = vrot.slane %v306, 5
        %v309 = vsel %vm271, %v304, %v308
        %v310 = vshrl.u32 %v218, 16
        %v312 = vrot.slane %v310, 4
        %v313 = vor.u32 %v312, %v308
        %v314 = vrot.slane %v313, 4
        %v316 = vshll.u32 %v219, 16
        %v318 = vrot.slane %v316, 5
        %v319 = vsel %vm271, %v314, %v318
        %v321 = vshrl.u32 %v220, 16
        %v323 = vrot.slane %v321, 4
        %v324 = vshll.u32 %v220, 16
        %v326 = vrot.slane %v324, 5
        %v327 = vor.u32 %v323, %v326
        %v328 = vrot.slane %v327, 4
        %v330 = vshll.u32 %v221, 16
        %v332 = vrot.slane %v330, 5
        %v333 = vsel %vm271, %v328, %v332
        %v334 = vshrl.u32 %v221, 16
        %v336 = vrot.slane %v334, 4
        %v337 = vor.u32 %v336, %v332
        %v338 = vrot.slane %v337, 4
        %v340 = vshll.u32 %v222, 16
        %v342 = vrot.slane %v340, 5
        %v343 = vsel %vm271, %v338, %v342
        %v345 = vshrl.u32 %v223, 16
        %v347 = vrot.slane %v345, 4
        %v348 = vshll.u32 %v223, 16
        %v350 = vrot.slane %v348, 5
        %v351 = vor.u32 %v347, %v350
        %v352 = vrot.slane %v351, 4
        %v354 = vshll.u32 %v224, 16
        %v356 = vrot.slane %v354, 5
        %v357 = vsel %vm271, %v352, %v356
        %v358 = vshrl.u32 %v224, 16
        %v360 = vrot.slane %v358, 4
        %v361 = vor.u32 %v360, %v356
        %v362 = vrot.slane %v361, 4
        %v364 = vshll.u32 %v225, 16
        %v366 = vrot.slane %v364, 5
        %v367 = vsel %vm271, %v362, %v366
        %v369 = vshrl.u32 %v226, 16
        %v371 = vrot.slane %v369, 4
        %v372 = vshll.u32 %v226, 16
        %v374 = vrot.slane %v372, 5
        %v375 = vor.u32 %v371, %v374
        %v376 = vrot.slane %v375, 4
        %v378 = vshll.u32 %v227, 16
        %v380 = vrot.slane %v378, 5
        %v381 = vsel %vm271, %v376, %v380
        %v382 = vshrl.u32 %v227, 16
        %v384 = vrot.slane %v382, 4
        %v385 = vor.u32 %v384, %v380
        %v386 = vrot.slane %v385, 4
        %v388 = vshll.u32 %v228, 16
        %v390 = vrot.slane %v388, 5
        %v391 = vsel %vm271, %v386, %v390
        %v393 = vshrl.u32 %v229, 16
        %v395 = vrot.slane %v393, 4
        %v396 = vshll.u32 %v229, 16
        %v398 = vrot.slane %v396, 5
        %v399 = vor.u32 %v395, %v398
        %v400 = vrot.slane %v399, 4
        %v402 = vshll.u32 %v230, 16
        %v404 = vrot.slane %v402, 5
        %v405 = vsel %vm271, %v400, %v404
        %v406 = vshrl.u32 %v230, 16
        %v408 = vrot.slane %v406, 4
        %v409 = vor.u32 %v408, %v404
        %v410 = vrot.slane %v409, 4
        %v412 = vshll.u32 %v231, 16
        %v414 = vrot.slane %v412, 5
        %v415 = vsel %vm271, %v410, %v414
        %v417 = vshrl.u32 %v232, 16
        %v419 = vrot.slane %v417, 4
        %v420 = vshll.u32 %v232, 16
        %v422 = vrot.slane %v420, 5
        %v423 = vor.u32 %v419, %v422
        %v424 = vrot.slane %v423, 4
        %v426 = vshll.u32 %v233, 16
        %v428 = vrot.slane %v426, 5
        %v429 = vsel %vm271, %v424, %v428
        %v430 = vshrl.u32 %v233, 16
        %v432 = vrot.slane %v430, 4
        %v433 = vor.u32 %v432, %v428
        %v434 = vrot.slane %v433, 4
        %v436 = vshll.u32 %v234, 16
        %v438 = vrot.slane %v436, 5
        %v439 = vsel %vm271, %v434, %v438
        %v441 = vshrl.u32 %v235, 16
        %v443 = vrot.slane %v441, 4
        %v444 = vshll.u32 %v235, 16
        %v446 = vrot.slane %v444, 5
        %v447 = vor.u32 %v443, %v446
        %v448 = vrot.slane %v447, 4
        %v450 = vshll.u32 %v236, 16
        %v452 = vrot.slane %v450, 5
        %v453 = vsel %vm271, %v448, %v452
        %v454 = vshrl.u32 %v236, 16
        %v456 = vrot.slane %v454, 4
        %v457 = vor.u32 %v456, %v452
        %v458 = vrot.slane %v457, 4
        %v460 = vshll.u32 %v237, 16
        %v462 = vrot.slane %v460, 5
        %v463 = vsel %vm271, %v458, %v462
        %v465 = vshrl.u32 %v238, 16
        %v467 = vrot.slane %v465, 4
        %v468 = vshll.u32 %v238, 16
        %v470 = vrot.slane %v468, 5
        %v471 = vor.u32 %v467, %v470
        %v472 = vrot.slane %v471, 4
        %v474 = vshll.u32 %v239, 16
        %v476 = vrot.slane %v474, 5
        %v477 = vsel %vm271, %v472, %v476
        %v478 = vshrl.u32 %v239, 16
        %v480 = vrot.slane %v478, 4
        %v481 = vor.u32 %v480, %v476
        %v482 = vrot.slane %v481, 4
        %v484 = vshll.u32 %v240, 16
        %v486 = vrot.slane %v484, 5
        %v487 = vsel %vm271, %v482, %v486
        %v489 = vshrl.u32 %v241, 16
        %v491 = vrot.slane %v489, 4
        %v492 = vshll.u32 %v241, 16
        %v494 = vrot.slane %v492, 5
        %v495 = vor.u32 %v491, %v494
        %v496 = vrot.slane %v495, 4
        %v498 = vshll.u32 %v242, 16
        %v500 = vrot.slane %v498, 5
        %v501 = vsel %vm271, %v496, %v500
        %v502 = vshrl.u32 %v242, 16
        %v504 = vrot.slane %v502, 4
        %v505 = vor.u32 %v504, %v500
        %v506 = vrot.slane %v505, 4
        %v508 = vshll.u32 %v243, 16
        %v510 = vrot.slane %v508, 5
        %v511 = vsel %vm271, %v506, %v510
        %v513 = vshrl.u32 %v244, 16
        %v515 = vrot.slane %v513, 4
        %v516 = vshll.u32 %v244, 16
        %v518 = vrot.slane %v516, 5
        %v519 = vor.u32 %v515, %v518
        %v520 = vrot.slane %v519, 4
        %v522 = vshll.u32 %v245, 16
        %v524 = vrot.slane %v522, 5
        %v525 = vsel %vm271, %v520, %v524
        %v526 = vshrl.u32 %v245, 16
        %v528 = vrot.slane %v526, 4
        %v529 = vor.u32 %v528, %v524
        %v530 = vrot.slane %v529, 4
        %v532 = vshll.u32 %v246, 16
        %v534 = vrot.slane %v532, 5
        %v535 = vsel %vm271, %v530, %v534
        %v537 = vshrl.u32 %v247, 16
        %v539 = vrot.slane %v537, 4
        %v540 = vshll.u32 %v247, 16
        %v542 = vrot.slane %v540, 5
        %v543 = vor.u32 %v539, %v542
        %v544 = vrot.slane %v543, 4
        %v546 = vshll.u32 %v248, 16
        %v548 = vrot.slane %v546, 5
        %v549 = vsel %vm271, %v544, %v548
        %v550 = vshrl.u32 %v248, 16
        %v552 = vrot.slane %v550, 4
        %v553 = vor.u32 %v552, %v548
        %v554 = vrot.slane %v553, 4
        %v556 = vshll.u32 %v249, 16
        %v558 = vrot.slane %v556, 5
        %v559 = vsel %vm271, %v554, %v558
        %v561 = vshrl.u32 %v250, 16
        %v563 = vrot.slane %v561, 4
        %v564 = vshll.u32 %v250, 16
        %v566 = vrot.slane %v564, 5
        %v567 = vor.u32 %v563, %v566
        %v568 = vrot.slane %v567, 4
        %v570 = vshll.u32 %v251, 16
        %v572 = vrot.slane %v570, 5
        %v573 = vsel %vm271, %v568, %v572
        %v574 = vshrl.u32 %v251, 16
        %v576 = vrot.slane %v574, 4
        %v577 = vor.u32 %v576, %v572
        %v578 = vrot.slane %v577, 4
        %v580 = vshll.u32 %v252, 16
        %v582 = vrot.slane %v580, 5
        %v583 = vsel %vm271, %v578, %v582
        %v585 = vshrl.u32 %v253, 16
        %v587 = vrot.slane %v585, 4
        %v588 = vshll.u32 %v253, 16
        %v590 = vrot.slane %v588, 5
        %v591 = vor.u32 %v587, %v590
        %v592 = vrot.slane %v591, 4
        %v594 = vshll.u32 %v254, 16
        %v596 = vrot.slane %v594, 5
        %v597 = vsel %vm271, %v592, %v596
        %v598 = vshrl.u32 %v254, 16
        %v600 = vrot.slane %v598, 4
        %v601 = vor.u32 %v600, %v596
        %v602 = vrot.slane %v601, 4
        %v604 = vshll.u32 %v255, 16
        %v606 = vrot.slane %v604, 5
        %v607 = vsel %vm271, %v602, %v606
        %v609 = vshrl.u32 %v256, 16
        %v611 = vrot.slane %v609, 4
        %v612 = vshll.u32 %v256, 16
        %v614 = vrot.slane %v612, 5
        %v615 = vor.u32 %v611, %v614
        %v616 = vrot.slane %v615, 4
        %v618 = vshll.u32 %v257, 16
        %v620 = vrot.slane %v618, 5
        %v621 = vsel %vm271, %v616, %v620
        %v622 = vshrl.u32 %v257, 16
        %v624 = vrot.slane %v622, 4
        %v625 = vor.u32 %v624, %v620
        %v626 = vrot.slane %v625, 4
        %v628 = vshll.u32 %v258, 16
        %v630 = vrot.slane %v628, 5
        %v631 = vsel %vm271, %v626, %v630
        %v633 = vshrl.u32 %v259, 16
        %v635 = vrot.slane %v633, 4
        %v636 = vshll.u32 %v259, 16
        %v638 = vrot.slane %v636, 5
        %v639 = vor.u32 %v635, %v638
        %v640 = vrot.slane %v639, 4
        %v642 = vshll.u32 %v260, 16
        %v644 = vrot.slane %v642, 5
        %v645 = vsel %vm271, %v640, %v644
        %v646 = vshrl.u32 %v260, 16
        %v648 = vrot.slane %v646, 4
        %v649 = vor.u32 %v648, %v644
        %v650 = vrot.slane %v649, 4
        %v652 = vshll.u32 %v261, 16
        %v654 = vrot.slane %v652, 5
        %v655 = vsel %vm271, %v650, %v654
        %s656 = scalar_lea.vmem %s212, 2
        %v657 = vld [vmem:[%s656] sm:$0x3]
        %v658 = vunpack.c.l.b16 %v285
        %v659 = vunpack.c.l.b16 %v295
        %v660 = vunpack.c.l.b16 %v309
        %v661 = vunpack.c.l.b16 %v319
        %v662 = vunpack.c.l.b16 %v333
        %v663 = vunpack.c.l.b16 %v343
        %v664 = vunpack.c.l.b16 %v357
        %v665 = vunpack.c.l.b16 %v367
        %v666 = vunpack.c.l.b16 %v381
        %v667 = vunpack.c.l.b16 %v391
        %v668 = vunpack.c.l.b16 %v405
        %v669 = vunpack.c.l.b16 %v415
        %v670 = vunpack.c.l.b16 %v429
        %v671 = vunpack.c.l.b16 %v439
        %v672 = vunpack.c.l.b16 %v453
        %v673 = vunpack.c.l.b16 %v463
        %v674 = vunpack.c.l.b16 %v477
        %v675 = vunpack.c.l.b16 %v487
        %v676 = vunpack.c.l.b16 %v501
        %v677 = vunpack.c.l.b16 %v511
        %v678 = vunpack.c.l.b16 %v525
        %v679 = vunpack.c.l.b16 %v535
        %v680 = vunpack.c.l.b16 %v549
        %v681 = vunpack.c.l.b16 %v559
        %v682 = vunpack.c.l.b16 %v573
        %v683 = vunpack.c.l.b16 %v583
        %v684 = vunpack.c.l.b16 %v597
        %v685 = vunpack.c.l.b16 %v607
        %v686 = vunpack.c.l.b16 %v621
        %v687 = vunpack.c.l.b16 %v631
        %v688 = vunpack.c.l.b16 %v645
        %v689 = vunpack.c.l.b16 %v655
        %v690 = vpack.c.b16 %v659, %v658
        %v691 = vpack.c.b16 %v661, %v660
        %v692 = vpack.c.b16 %v663, %v662
        %v693 = vpack.c.b16 %v665, %v664
        %v694 = vpack.c.b16 %v667, %v666
        %v695 = vpack.c.b16 %v669, %v668
        %v696 = vpack.c.b16 %v671, %v670
        %v697 = vpack.c.b16 %v673, %v672
        %v698 = vpack.c.b16 %v675, %v674
        %v699 = vpack.c.b16 %v677, %v676
        %v700 = vpack.c.b16 %v679, %v678
        %v701 = vpack.c.b16 %v681, %v680
        %v702 = vpack.c.b16 %v683, %v682
        %v703 = vpack.c.b16 %v685, %v684
        %v704 = vpack.c.b16 %v687, %v686
        %v705 = vpack.c.b16 %v689, %v688
        %vm706 = vcmask 31744
        %v708 = vsel %vm706, %v690, 0
        %v711 = vsel %vm706, %v691, 0
        %v714 = vsel %vm706, %v692, 0
        %v717 = vsel %vm706, %v693, 0
        %v720 = vsel %vm706, %v694, 0
        %v723 = vsel %vm706, %v695, 0
        %v726 = vsel %vm706, %v696, 0
        %v729 = vsel %vm706, %v697, 0
        %v732 = vsel %vm706, %v698, 0
        %v735 = vsel %vm706, %v699, 0
        %v738 = vsel %vm706, %v700, 0
        %v741 = vsel %vm706, %v701, 0
        %v744 = vsel %vm706, %v702, 0
        %v747 = vsel %vm706, %v703, 0
        %v750 = vsel %vm706, %v704, 0
        %v753 = vsel %vm706, %v705, 0
        %vm755 = vcmask 1041408
        %v757 = vsel %vm755, %v657, 0
        %759 = vmatpush.bf16.msra.mxu0 0
        %760 = vmatpush.bf16.msra.mxu0 0
        %761 = vmatpush.bf16.msra.mxu0 0
        %762 = vmatpush.bf16.msra.mxu0 0
        %763 = vmatpush.bf16.msra.mxu0 0
        %764 = vmatpush.bf16.msra.mxu0 0
        %765 = vmatpush.bf16.msra.mxu0 0
        %766 = vmatpush.bf16.msra.mxu0 %v757
        %767 = vmatmul.bf16.gmra.mxu0 %v708
        %v768 = vpop.f32.mrf.mxu0
        %v769 = vadd.f32 0.0, %v768
        %v770 = vpop.f32.mrf.mxu0
        %v771 = vadd.f32 0.0, %v770
        %772 = vmatmul.bf16.gmra.mxu0 %v711
        %v773 = vpop.f32.mrf.mxu0
        %v774 = vadd.f32 0.0, %v773
        %v775 = vpop.f32.mrf.mxu0
        %v776 = vadd.f32 0.0, %v775
        %777 = vmatmul.bf16.gmra.mxu0 %v714
        %v778 = vpop.f32.mrf.mxu0
        %v779 = vadd.f32 0.0, %v778
        %v780 = vpop.f32.mrf.mxu0
        %v781 = vadd.f32 0.0, %v780
        %782 = vmatmul.bf16.gmra.mxu0 %v717
        %v783 = vpop.f32.mrf.mxu0
        %v784 = vadd.f32 0.0, %v783
        %v785 = vpop.f32.mrf.mxu0
        %v786 = vadd.f32 0.0, %v785
        %787 = vmatmul.bf16.gmra.mxu0 %v720
        %v788 = vpop.f32.mrf.mxu0
        %v789 = vadd.f32 0.0, %v788
        %v790 = vpop.f32.mrf.mxu0
        %v791 = vadd.f32 0.0, %v790
        %792 = vmatmul.bf16.gmra.mxu0 %v723
        %v793 = vpop.f32.mrf.mxu0
        %v794 = vadd.f32 0.0, %v793
        %v795 = vpop.f32.mrf.mxu0
        %v796 = vadd.f32 0.0, %v795
        %797 = vmatmul.bf16.gmra.mxu0 %v726
        %v798 = vpop.f32.mrf.mxu0
        %v799 = vadd.f32 0.0, %v798
        %v800 = vpop.f32.mrf.mxu0
        %v801 = vadd.f32 0.0, %v800
        %802 = vmatmul.bf16.gmra.mxu0 %v729
        %v803 = vpop.f32.mrf.mxu0
        %v804 = vadd.f32 0.0, %v803
        %v805 = vpop.f32.mrf.mxu0
        %v806 = vadd.f32 0.0, %v805
        %807 = vmatmul.bf16.gmra.mxu0 %v732
        %v808 = vpop.f32.mrf.mxu0
        %v809 = vadd.f32 0.0, %v808
        %v810 = vpop.f32.mrf.mxu0
        %v811 = vadd.f32 0.0, %v810
        %812 = vmatmul.bf16.gmra.mxu0 %v735
        %v813 = vpop.f32.mrf.mxu0
        %v814 = vadd.f32 0.0, %v813
        %v815 = vpop.f32.mrf.mxu0
        %v816 = vadd.f32 0.0, %v815
        %817 = vmatmul.bf16.gmra.mxu0 %v738
        %v818 = vpop.f32.mrf.mxu0
        %v819 = vadd.f32 0.0, %v818
        %v820 = vpop.f32.mrf.mxu0
        %v821 = vadd.f32 0.0, %v820
        %822 = vmatmul.bf16.gmra.mxu0 %v741
        %v823 = vpop.f32.mrf.mxu0
        %v824 = vadd.f32 0.0, %v823
        %v825 = vpop.f32.mrf.mxu0
        %v826 = vadd.f32 0.0, %v825
        %827 = vmatmul.bf16.gmra.mxu0 %v744
        %v828 = vpop.f32.mrf.mxu0
        %v829 = vadd.f32 0.0, %v828
        %v830 = vpop.f32.mrf.mxu0
        %v831 = vadd.f32 0.0, %v830
        %832 = vmatmul.bf16.gmra.mxu0 %v747
        %v833 = vpop.f32.mrf.mxu0
        %v834 = vadd.f32 0.0, %v833
        %v835 = vpop.f32.mrf.mxu0
        %v836 = vadd.f32 0.0, %v835
        %837 = vmatmul.bf16.gmra.mxu0 %v750
        %v838 = vpop.f32.mrf.mxu0
        %v839 = vadd.f32 0.0, %v838
        %v840 = vpop.f32.mrf.mxu0
        %v841 = vadd.f32 0.0, %v840
        %842 = vmatmul.bf16.gmra.mxu0 %v753
        %v843 = vpop.f32.mrf.mxu0
        %v844 = vadd.f32 0.0, %v843
        %v845 = vpop.f32.mrf.mxu0
        %v846 = vadd.f32 0.0, %v845
        %847 = vdwg.mxu0
        %v880 = vunpack.c.l.b16 %v214
        %v881 = vunpack.c.l.b16 %v215
        %v882 = vunpack.c.l.b16 %v217
        %v883 = vunpack.c.l.b16 %v218
        %v884 = vunpack.c.l.b16 %v220
        %v885 = vunpack.c.l.b16 %v221
        %v886 = vunpack.c.l.b16 %v223
        %v887 = vunpack.c.l.b16 %v224
        %v888 = vunpack.c.l.b16 %v226
        %v889 = vunpack.c.l.b16 %v227
        %v890 = vunpack.c.l.b16 %v229
        %v891 = vunpack.c.l.b16 %v230
        %v892 = vunpack.c.l.b16 %v232
        %v893 = vunpack.c.l.b16 %v233
        %v894 = vunpack.c.l.b16 %v235
        %v895 = vunpack.c.l.b16 %v236
        %v896 = vunpack.c.l.b16 %v238
        %v897 = vunpack.c.l.b16 %v239
        %v898 = vunpack.c.l.b16 %v241
        %v899 = vunpack.c.l.b16 %v242
        %v900 = vunpack.c.l.b16 %v244
        %v901 = vunpack.c.l.b16 %v245
        %v902 = vunpack.c.l.b16 %v247
        %v903 = vunpack.c.l.b16 %v248
        %v904 = vunpack.c.l.b16 %v250
        %v905 = vunpack.c.l.b16 %v251
        %v906 = vunpack.c.l.b16 %v253
        %v907 = vunpack.c.l.b16 %v254
        %v908 = vunpack.c.l.b16 %v256
        %v909 = vunpack.c.l.b16 %v257
        %v910 = vunpack.c.l.b16 %v259
        %v911 = vunpack.c.l.b16 %v260
        %v912 = vpack.c.b16 %v881, %v880
        %v913 = vpack.c.b16 %v883, %v882
        %v914 = vpack.c.b16 %v885, %v884
        %v915 = vpack.c.b16 %v887, %v886
        %v916 = vpack.c.b16 %v889, %v888
        %v917 = vpack.c.b16 %v891, %v890
        %v918 = vpack.c.b16 %v893, %v892
        %v919 = vpack.c.b16 %v895, %v894
        %v920 = vpack.c.b16 %v897, %v896
        %v921 = vpack.c.b16 %v899, %v898
        %v922 = vpack.c.b16 %v901, %v900
        %v923 = vpack.c.b16 %v903, %v902
        %v924 = vpack.c.b16 %v905, %v904
        %v925 = vpack.c.b16 %v907, %v906
        %v926 = vpack.c.b16 %v909, %v908
        %v927 = vpack.c.b16 %v911, %v910
        %v929 = vsel %vm706, %v912, 0
        %v932 = vsel %vm706, %v913, 0
        %v935 = vsel %vm706, %v914, 0
        %v938 = vsel %vm706, %v915, 0
        %v941 = vsel %vm706, %v916, 0
        %v944 = vsel %vm706, %v917, 0
        %v947 = vsel %vm706, %v918, 0
        %v950 = vsel %vm706, %v919, 0
        %v953 = vsel %vm706, %v920, 0
        %v956 = vsel %vm706, %v921, 0
        %v959 = vsel %vm706, %v922, 0
        %v962 = vsel %vm706, %v923, 0
        %v965 = vsel %vm706, %v924, 0
        %v968 = vsel %vm706, %v925, 0
        %v971 = vsel %vm706, %v926, 0
        %v974 = vsel %vm706, %v927, 0
        %v977 = vsel %vm755, %v268, 0
        %979 = vmatpush.bf16.msra.mxu0 0
        %980 = vmatpush.bf16.msra.mxu0 0
        %981 = vmatpush.bf16.msra.mxu0 0
        %982 = vmatpush.bf16.msra.mxu0 0
        %983 = vmatpush.bf16.msra.mxu0 0
        %984 = vmatpush.bf16.msra.mxu0 0
        %985 = vmatpush.bf16.msra.mxu0 0
        %986 = vmatpush.bf16.msra.mxu0 %v977
        %987 = vmatmul.bf16.gmra.mxu0 %v929
        %v988 = vpop.f32.mrf.mxu0
        %v989 = vadd.f32 %v769, %v988
        %v990 = vpop.f32.mrf.mxu0
        %v991 = vadd.f32 %v771, %v990
        %992 = vmatmul.bf16.gmra.mxu0 %v932
        %v993 = vpop.f32.mrf.mxu0
        %v994 = vadd.f32 %v774, %v993
        %v995 = vpop.f32.mrf.mxu0
        %v996 = vadd.f32 %v776, %v995
        %997 = vmatmul.bf16.gmra.mxu0 %v935
        %v998 = vpop.f32.mrf.mxu0
        %v999 = vadd.f32 %v779, %v998
        %v1000 = vpop.f32.mrf.mxu0
        %v1001 = vadd.f32 %v781, %v1000
        %1002 = vmatmul.bf16.gmra.mxu0 %v938
        %v1003 = vpop.f32.mrf.mxu0
        %v1004 = vadd.f32 %v784, %v1003
        %v1005 = vpop.f32.mrf.mxu0
        %v1006 = vadd.f32 %v786, %v1005
        %1007 = vmatmul.bf16.gmra.mxu0 %v941
        %v1008 = vpop.f32.mrf.mxu0
        %v1009 = vadd.f32 %v789, %v1008
        %v1010 = vpop.f32.mrf.mxu0
        %v1011 = vadd.f32 %v791, %v1010
        %1012 = vmatmul.bf16.gmra.mxu0 %v944
        %v1013 = vpop.f32.mrf.mxu0
        %v1014 = vadd.f32 %v794, %v1013
        %v1015 = vpop.f32.mrf.mxu0
        %v1016 = vadd.f32 %v796, %v1015
        %1017 = vmatmul.bf16.gmra.mxu0 %v947
        %v1018 = vpop.f32.mrf.mxu0
        %v1019 = vadd.f32 %v799, %v1018
        %v1020 = vpop.f32.mrf.mxu0
        %v1021 = vadd.f32 %v801, %v1020
        %1022 = vmatmul.bf16.gmra.mxu0 %v950
        %v1023 = vpop.f32.mrf.mxu0
        %v1024 = vadd.f32 %v804, %v1023
        %v1025 = vpop.f32.mrf.mxu0
        %v1026 = vadd.f32 %v806, %v1025
        %1027 = vmatmul.bf16.gmra.mxu0 %v953
        %v1028 = vpop.f32.mrf.mxu0
        %v1029 = vadd.f32 %v809, %v1028
        %v1030 = vpop.f32.mrf.mxu0
        %v1031 = vadd.f32 %v811, %v1030
        %1032 = vmatmul.bf16.gmra.mxu0 %v956
        %v1033 = vpop.f32.mrf.mxu0
        %v1034 = vadd.f32 %v814, %v1033
        %v1035 = vpop.f32.mrf.mxu0
        %v1036 = vadd.f32 %v816, %v1035
        %1037 = vmatmul.bf16.gmra.mxu0 %v959
        %v1038 = vpop.f32.mrf.mxu0
        %v1039 = vadd.f32 %v819, %v1038
        %v1040 = vpop.f32.mrf.mxu0
        %v1041 = vadd.f32 %v821, %v1040
        %1042 = vmatmul.bf16.gmra.mxu0 %v962
        %v1043 = vpop.f32.mrf.mxu0
        %v1044 = vadd.f32 %v824, %v1043
        %v1045 = vpop.f32.mrf.mxu0
        %v1046 = vadd.f32 %v826, %v1045
        %1047 = vmatmul.bf16.gmra.mxu0 %v965
        %v1048 = vpop.f32.mrf.mxu0
        %v1049 = vadd.f32 %v829, %v1048
        %v1050 = vpop.f32.mrf.mxu0
        %v1051 = vadd.f32 %v831, %v1050
        %1052 = vmatmul.bf16.gmra.mxu0 %v968
        %v1053 = vpop.f32.mrf.mxu0
        %v1054 = vadd.f32 %v834, %v1053
        %v1055 = vpop.f32.mrf.mxu0
        %v1056 = vadd.f32 %v836, %v1055
        %1057 = vmatmul.bf16.gmra.mxu0 %v971
        %v1058 = vpop.f32.mrf.mxu0
        %v1059 = vadd.f32 %v839, %v1058
        %v1060 = vpop.f32.mrf.mxu0
        %v1061 = vadd.f32 %v841, %v1060
        %1062 = vmatmul.bf16.gmra.mxu0 %v974
        %v1063 = vpop.f32.mrf.mxu0
        %v1064 = vadd.f32 %v844, %v1063
        %v1065 = vpop.f32.mrf.mxu0
        %v1066 = vadd.f32 %v846, %v1065
        %1067 = vdwg.mxu0
        %vm1084 = vcmask 1042432
        %vm1085 = vcmask 1046532
        %vm1086 = vmor %vm1084, %vm1085
        %v1087 = vrot.slane %v214, 5
        %v1088 = vrot.slane %v1087, 4
        %v1089 = vrot.slane %v215, 5
        %v1090 = vsel %vm1086, %v1088, %v1089
        %v1091 = vrot.slane %v1089, 4
        %v1092 = vrot.slane %v216, 5
        %v1093 = vsel %vm1086, %v1091, %v1092
        %v1094 = vrot.slane %v217, 5
        %v1095 = vrot.slane %v1094, 4
        %v1096 = vrot.slane %v218, 5
        %v1097 = vsel %vm1086, %v1095, %v1096
        %v1098 = vrot.slane %v1096, 4
        %v1099 = vrot.slane %v219, 5
        %v1100 = vsel %vm1086, %v1098, %v1099
        %v1101 = vrot.slane %v220, 5
        %v1102 = vrot.slane %v1101, 4
        %v1103 = vrot.slane %v221, 5
        %v1104 = vsel %vm1086, %v1102, %v1103
        %v1105 = vrot.slane %v1103, 4
        %v1106 = vrot.slane %v222, 5
        %v1107 = vsel %vm1086, %v1105, %v1106
        %v1108 = vrot.slane %v223, 5
        %v1109 = vrot.slane %v1108, 4
        %v1110 = vrot.slane %v224, 5
        %v1111 = vsel %vm1086, %v1109, %v1110
        %v1112 = vrot.slane %v1110, 4
        %v1113 = vrot.slane %v225, 5
        %v1114 = vsel %vm1086, %v1112, %v1113
        %v1115 = vrot.slane %v226, 5
        %v1116 = vrot.slane %v1115, 4
        %v1117 = vrot.slane %v227, 5
        %v1118 = vsel %vm1086, %v1116, %v1117
        %v1119 = vrot.slane %v1117, 4
        %v1120 = vrot.slane %v228, 5
        %v1121 = vsel %vm1086, %v1119, %v1120
        %v1122 = vrot.slane %v229, 5
        %v1123 = vrot.slane %v1122, 4
        %v1124 = vrot.slane %v230, 5
        %v1125 = vsel %vm1086, %v1123, %v1124
        %v1126 = vrot.slane %v1124, 4
        %v1127 = vrot.slane %v231, 5
        %v1128 = vsel %vm1086, %v1126, %v1127
        %v1129 = vrot.slane %v232, 5
        %v1130 = vrot.slane %v1129, 4
        %v1131 = vrot.slane %v233, 5
        %v1132 = vsel %vm1086, %v1130, %v1131
        %v1133 = vrot.slane %v1131, 4
        %v1134 = vrot.slane %v234, 5
        %v1135 = vsel %vm1086, %v1133, %v1134
        %v1136 = vrot.slane %v235, 5
        %v1137 = vrot.slane %v1136, 4
        %v1138 = vrot.slane %v236, 5
        %v1139 = vsel %vm1086, %v1137, %v1138
        %v1140 = vrot.slane %v1138, 4
        %v1141 = vrot.slane %v237, 5
        %v1142 = vsel %vm1086, %v1140, %v1141
        %v1143 = vrot.slane %v238, 5
        %v1144 = vrot.slane %v1143, 4
        %v1145 = vrot.slane %v239, 5
        %v1146 = vsel %vm1086, %v1144, %v1145
        %v1147 = vrot.slane %v1145, 4
        %v1148 = vrot.slane %v240, 5
        %v1149 = vsel %vm1086, %v1147, %v1148
        %v1150 = vrot.slane %v241, 5
        %v1151 = vrot.slane %v1150, 4
        %v1152 = vrot.slane %v242, 5
        %v1153 = vsel %vm1086, %v1151, %v1152
        %v1154 = vrot.slane %v1152, 4
        %v1155 = vrot.slane %v243, 5
        %v1156 = vsel %vm1086, %v1154, %v1155
        %v1157 = vrot.slane %v244, 5
        %v1158 = vrot.slane %v1157, 4
        %v1159 = vrot.slane %v245, 5
        %v1160 = vsel %vm1086, %v1158, %v1159
        %v1161 = vrot.slane %v1159, 4
        %v1162 = vrot.slane %v246, 5
        %v1163 = vsel %vm1086, %v1161, %v1162
        %v1164 = vrot.slane %v247, 5
        %v1165 = vrot.slane %v1164, 4
        %v1166 = vrot.slane %v248, 5
        %v1167 = vsel %vm1086, %v1165, %v1166
        %v1168 = vrot.slane %v1166, 4
        %v1169 = vrot.slane %v249, 5
        %v1170 = vsel %vm1086, %v1168, %v1169
        %v1171 = vrot.slane %v250, 5
        %v1172 = vrot.slane %v1171, 4
        %v1173 = vrot.slane %v251, 5
        %v1174 = vsel %vm1086, %v1172, %v1173
        %v1175 = vrot.slane %v1173, 4
        %v1176 = vrot.slane %v252, 5
        %v1177 = vsel %vm1086, %v1175, %v1176
        %v1178 = vrot.slane %v253, 5
        %v1179 = vrot.slane %v1178, 4
        %v1180 = vrot.slane %v254, 5
        %v1181 = vsel %vm1086, %v1179, %v1180
        %v1182 = vrot.slane %v1180, 4
        %v1183 = vrot.slane %v255, 5
        %v1184 = vsel %vm1086, %v1182, %v1183
        %v1185 = vrot.slane %v256, 5
        %v1186 = vrot.slane %v1185, 4
        %v1187 = vrot.slane %v257, 5
        %v1188 = vsel %vm1086, %v1186, %v1187
        %v1189 = vrot.slane %v1187, 4
        %v1190 = vrot.slane %v258, 5
        %v1191 = vsel %vm1086, %v1189, %v1190
        %v1192 = vrot.slane %v259, 5
        %v1193 = vrot.slane %v1192, 4
        %v1194 = vrot.slane %v260, 5
        %v1195 = vsel %vm1086, %v1193, %v1194
        %v1196 = vrot.slane %v1194, 4
        %v1197 = vrot.slane %v261, 5
        %v1198 = vsel %vm1086, %v1196, %v1197
        %s1199 = scalar_lea.vmem %s212, 4
        %v1200 = vld [vmem:[%s1199] sm:$0x3]
        %v1201 = vunpack.c.l.b16 %v1090
        %v1202 = vunpack.c.l.b16 %v1093
        %v1203 = vunpack.c.l.b16 %v1097
        %v1204 = vunpack.c.l.b16 %v1100
        %v1205 = vunpack.c.l.b16 %v1104
        %v1206 = vunpack.c.l.b16 %v1107
        %v1207 = vunpack.c.l.b16 %v1111
        %v1208 = vunpack.c.l.b16 %v1114
        %v1209 = vunpack.c.l.b16 %v1118
        %v1210 = vunpack.c.l.b16 %v1121
        %v1211 = vunpack.c.l.b16 %v1125
        %v1212 = vunpack.c.l.b16 %v1128
        %v1213 = vunpack.c.l.b16 %v1132
        %v1214 = vunpack.c.l.b16 %v1135
        %v1215 = vunpack.c.l.b16 %v1139
        %v1216 = vunpack.c.l.b16 %v1142
        %v1217 = vunpack.c.l.b16 %v1146
        %v1218 = vunpack.c.l.b16 %v1149
        %v1219 = vunpack.c.l.b16 %v1153
        %v1220 = vunpack.c.l.b16 %v1156
        %v1221 = vunpack.c.l.b16 %v1160
        %v1222 = vunpack.c.l.b16 %v1163
        %v1223 = vunpack.c.l.b16 %v1167
        %v1224 = vunpack.c.l.b16 %v1170
        %v1225 = vunpack.c.l.b16 %v1174
        %v1226 = vunpack.c.l.b16 %v1177
        %v1227 = vunpack.c.l.b16 %v1181
        %v1228 = vunpack.c.l.b16 %v1184
        %v1229 = vunpack.c.l.b16 %v1188
        %v1230 = vunpack.c.l.b16 %v1191
        %v1231 = vunpack.c.l.b16 %v1195
        %v1232 = vunpack.c.l.b16 %v1198
        %v1233 = vpack.c.b16 %v1202, %v1201
        %v1234 = vpack.c.b16 %v1204, %v1203
        %v1235 = vpack.c.b16 %v1206, %v1205
        %v1236 = vpack.c.b16 %v1208, %v1207
        %v1237 = vpack.c.b16 %v1210, %v1209
        %v1238 = vpack.c.b16 %v1212, %v1211
        %v1239 = vpack.c.b16 %v1214, %v1213
        %v1240 = vpack.c.b16 %v1216, %v1215
        %v1241 = vpack.c.b16 %v1218, %v1217
        %v1242 = vpack.c.b16 %v1220, %v1219
        %v1243 = vpack.c.b16 %v1222, %v1221
        %v1244 = vpack.c.b16 %v1224, %v1223
        %v1245 = vpack.c.b16 %v1226, %v1225
        %v1246 = vpack.c.b16 %v1228, %v1227
        %v1247 = vpack.c.b16 %v1230, %v1229
        %v1248 = vpack.c.b16 %v1232, %v1231
        %v1250 = vsel %vm706, %v1233, 0
        %v1253 = vsel %vm706, %v1234, 0
        %v1256 = vsel %vm706, %v1235, 0
        %v1259 = vsel %vm706, %v1236, 0
        %v1262 = vsel %vm706, %v1237, 0
        %v1265 = vsel %vm706, %v1238, 0
        %v1268 = vsel %vm706, %v1239, 0
        %v1271 = vsel %vm706, %v1240, 0
        %v1274 = vsel %vm706, %v1241, 0
        %v1277 = vsel %vm706, %v1242, 0
        %v1280 = vsel %vm706, %v1243, 0
        %v1283 = vsel %vm706, %v1244, 0
        %v1286 = vsel %vm706, %v1245, 0
        %v1289 = vsel %vm706, %v1246, 0
        %v1292 = vsel %vm706, %v1247, 0
        %v1295 = vsel %vm706, %v1248, 0
        %v1298 = vsel %vm755, %v1200, 0
        %1300 = vmatpush.bf16.msra.mxu0 0
        %1301 = vmatpush.bf16.msra.mxu0 0
        %1302 = vmatpush.bf16.msra.mxu0 0
        %1303 = vmatpush.bf16.msra.mxu0 0
        %1304 = vmatpush.bf16.msra.mxu0 0
        %1305 = vmatpush.bf16.msra.mxu0 0
        %1306 = vmatpush.bf16.msra.mxu0 0
        %1307 = vmatpush.bf16.msra.mxu0 %v1298
        %1308 = vmatmul.bf16.gmra.mxu0 %v1250
        %v1309 = vpop.f32.mrf.mxu0
        %v1310 = vadd.f32 0.0, %v1309
        %v1311 = vpop.f32.mrf.mxu0
        %v1312 = vadd.f32 0.0, %v1311
        %1313 = vmatmul.bf16.gmra.mxu0 %v1253
        %v1314 = vpop.f32.mrf.mxu0
        %v1315 = vadd.f32 0.0, %v1314
        %v1316 = vpop.f32.mrf.mxu0
        %v1317 = vadd.f32 0.0, %v1316
        %1318 = vmatmul.bf16.gmra.mxu0 %v1256
        %v1319 = vpop.f32.mrf.mxu0
        %v1320 = vadd.f32 0.0, %v1319
        %v1321 = vpop.f32.mrf.mxu0
        %v1322 = vadd.f32 0.0, %v1321
        %1323 = vmatmul.bf16.gmra.mxu0 %v1259
        %v1324 = vpop.f32.mrf.mxu0
        %v1325 = vadd.f32 0.0, %v1324
        %v1326 = vpop.f32.mrf.mxu0
        %v1327 = vadd.f32 0.0, %v1326
        %1328 = vmatmul.bf16.gmra.mxu0 %v1262
        %v1329 = vpop.f32.mrf.mxu0
        %v1330 = vadd.f32 0.0, %v1329
        %v1331 = vpop.f32.mrf.mxu0
        %v1332 = vadd.f32 0.0, %v1331
        %1333 = vmatmul.bf16.gmra.mxu0 %v1265
        %v1334 = vpop.f32.mrf.mxu0
        %v1335 = vadd.f32 0.0, %v1334
        %v1336 = vpop.f32.mrf.mxu0
        %v1337 = vadd.f32 0.0, %v1336
        %1338 = vmatmul.bf16.gmra.mxu0 %v1268
        %v1339 = vpop.f32.mrf.mxu0
        %v1340 = vadd.f32 0.0, %v1339
        %v1341 = vpop.f32.mrf.mxu0
        %v1342 = vadd.f32 0.0, %v1341
        %1343 = vmatmul.bf16.gmra.mxu0 %v1271
        %v1344 = vpop.f32.mrf.mxu0
        %v1345 = vadd.f32 0.0, %v1344
        %v1346 = vpop.f32.mrf.mxu0
        %v1347 = vadd.f32 0.0, %v1346
        %1348 = vmatmul.bf16.gmra.mxu0 %v1274
        %v1349 = vpop.f32.mrf.mxu0
        %v1350 = vadd.f32 0.0, %v1349
        %v1351 = vpop.f32.mrf.mxu0
        %v1352 = vadd.f32 0.0, %v1351
        %1353 = vmatmul.bf16.gmra.mxu0 %v1277
        %v1354 = vpop.f32.mrf.mxu0
        %v1355 = vadd.f32 0.0, %v1354
        %v1356 = vpop.f32.mrf.mxu0
        %v1357 = vadd.f32 0.0, %v1356
        %1358 = vmatmul.bf16.gmra.mxu0 %v1280
        %v1359 = vpop.f32.mrf.mxu0
        %v1360 = vadd.f32 0.0, %v1359
        %v1361 = vpop.f32.mrf.mxu0
        %v1362 = vadd.f32 0.0, %v1361
        %1363 = vmatmul.bf16.gmra.mxu0 %v1283
        %v1364 = vpop.f32.mrf.mxu0
        %v1365 = vadd.f32 0.0, %v1364
        %v1366 = vpop.f32.mrf.mxu0
        %v1367 = vadd.f32 0.0, %v1366
        %1368 = vmatmul.bf16.gmra.mxu0 %v1286
        %v1369 = vpop.f32.mrf.mxu0
        %v1370 = vadd.f32 0.0, %v1369
        %v1371 = vpop.f32.mrf.mxu0
        %v1372 = vadd.f32 0.0, %v1371
        %1373 = vmatmul.bf16.gmra.mxu0 %v1289
        %v1374 = vpop.f32.mrf.mxu0
        %v1375 = vadd.f32 0.0, %v1374
        %v1376 = vpop.f32.mrf.mxu0
        %v1377 = vadd.f32 0.0, %v1376
        %1378 = vmatmul.bf16.gmra.mxu0 %v1292
        %v1379 = vpop.f32.mrf.mxu0
        %v1380 = vadd.f32 0.0, %v1379
        %v1381 = vpop.f32.mrf.mxu0
        %v1382 = vadd.f32 0.0, %v1381
        %1383 = vmatmul.bf16.gmra.mxu0 %v1295
        %v1384 = vpop.f32.mrf.mxu0
        %v1385 = vadd.f32 0.0, %v1384
        %v1386 = vpop.f32.mrf.mxu0
        %v1387 = vadd.f32 0.0, %v1386
        %1388 = vdwg.mxu0
        %v1389 = vadd.f32 %v989, %v1310
        %v1390 = vadd.f32 %v991, %v1312
        %v1391 = vadd.f32 %v994, %v1315
        %v1392 = vadd.f32 %v996, %v1317
        %v1393 = vadd.f32 %v999, %v1320
        %v1394 = vadd.f32 %v1001, %v1322
        %v1395 = vadd.f32 %v1004, %v1325
        %v1396 = vadd.f32 %v1006, %v1327
        %v1397 = vadd.f32 %v1009, %v1330
        %v1398 = vadd.f32 %v1011, %v1332
        %v1399 = vadd.f32 %v1014, %v1335
        %v1400 = vadd.f32 %v1016, %v1337
        %v1401 = vadd.f32 %v1019, %v1340
        %v1402 = vadd.f32 %v1021, %v1342
        %v1403 = vadd.f32 %v1024, %v1345
        %v1404 = vadd.f32 %v1026, %v1347
        %v1405 = vadd.f32 %v1029, %v1350
        %v1406 = vadd.f32 %v1031, %v1352
        %v1407 = vadd.f32 %v1034, %v1355
        %v1408 = vadd.f32 %v1036, %v1357
        %v1409 = vadd.f32 %v1039, %v1360
        %v1410 = vadd.f32 %v1041, %v1362
        %v1411 = vadd.f32 %v1044, %v1365
        %v1412 = vadd.f32 %v1046, %v1367
        %v1413 = vadd.f32 %v1049, %v1370
        %v1414 = vadd.f32 %v1051, %v1372
        %v1415 = vadd.f32 %v1054, %v1375
        %v1416 = vadd.f32 %v1056, %v1377
        %v1417 = vadd.f32 %v1059, %v1380
        %v1418 = vadd.f32 %v1061, %v1382
        %v1419 = vadd.f32 %v1064, %v1385
        %v1420 = vadd.f32 %v1066, %v1387
        %s1421 = scalar_lea.vmem %s212, 6
        %v1422 = vld [vmem:[%s1421] sm:$0x3]
        %v1425 = vunpack.c.l.b16 %v262
        %v1426 = vunpack.c.l.b16 %v263
        %v1427 = vpack.c.b16 %v1426, %v1425
        %v1429 = vsel %vm706, %v1427, 0
        %v1432 = vsel %vm755, %v1422, 0
        %1434 = vmatpush.bf16.msra.mxu0 0
        %1435 = vmatpush.bf16.msra.mxu0 0
        %1436 = vmatpush.bf16.msra.mxu0 0
        %1437 = vmatpush.bf16.msra.mxu0 0
        %1438 = vmatpush.bf16.msra.mxu0 0
        %1439 = vmatpush.bf16.msra.mxu0 0
        %1440 = vmatpush.bf16.msra.mxu0 0
        %1441 = vmatpush.bf16.msra.mxu0 %v1432
        %1442 = vmatmul.bf16.gmra.mxu0 %v932
        %v1443 = vpop.f32.mrf.mxu0
        %v1444 = vadd.f32 0.0, %v1443
        %v1445 = vpop.f32.mrf.mxu0
        %v1446 = vadd.f32 0.0, %v1445
        %1447 = vmatmul.bf16.gmra.mxu0 %v935
        %v1448 = vpop.f32.mrf.mxu0
        %v1449 = vadd.f32 0.0, %v1448
        %v1450 = vpop.f32.mrf.mxu0
        %v1451 = vadd.f32 0.0, %v1450
        %1452 = vmatmul.bf16.gmra.mxu0 %v938
        %v1453 = vpop.f32.mrf.mxu0
        %v1454 = vadd.f32 0.0, %v1453
        %v1455 = vpop.f32.mrf.mxu0
        %v1456 = vadd.f32 0.0, %v1455
        %1457 = vmatmul.bf16.gmra.mxu0 %v941
        %v1458 = vpop.f32.mrf.mxu0
        %v1459 = vadd.f32 0.0, %v1458
        %v1460 = vpop.f32.mrf.mxu0
        %v1461 = vadd.f32 0.0, %v1460
        %1462 = vmatmul.bf16.gmra.mxu0 %v944
        %v1463 = vpop.f32.mrf.mxu0
        %v1464 = vadd.f32 0.0, %v1463
        %v1465 = vpop.f32.mrf.mxu0
        %v1466 = vadd.f32 0.0, %v1465
        %1467 = vmatmul.bf16.gmra.mxu0 %v947
        %v1468 = vpop.f32.mrf.mxu0
        %v1469 = vadd.f32 0.0, %v1468
        %v1470 = vpop.f32.mrf.mxu0
        %v1471 = vadd.f32 0.0, %v1470
        %1472 = vmatmul.bf16.gmra.mxu0 %v950
        %v1473 = vpop.f32.mrf.mxu0
        %v1474 = vadd.f32 0.0, %v1473
        %v1475 = vpop.f32.mrf.mxu0
        %v1476 = vadd.f32 0.0, %v1475
        %1477 = vmatmul.bf16.gmra.mxu0 %v953
        %v1478 = vpop.f32.mrf.mxu0
        %v1479 = vadd.f32 0.0, %v1478
        %v1480 = vpop.f32.mrf.mxu0
        %v1481 = vadd.f32 0.0, %v1480
        %1482 = vmatmul.bf16.gmra.mxu0 %v956
        %v1483 = vpop.f32.mrf.mxu0
        %v1484 = vadd.f32 0.0, %v1483
        %v1485 = vpop.f32.mrf.mxu0
        %v1486 = vadd.f32 0.0, %v1485
        %1487 = vmatmul.bf16.gmra.mxu0 %v959
        %v1488 = vpop.f32.mrf.mxu0
        %v1489 = vadd.f32 0.0, %v1488
        %v1490 = vpop.f32.mrf.mxu0
        %v1491 = vadd.f32 0.0, %v1490
        %1492 = vmatmul.bf16.gmra.mxu0 %v962
        %v1493 = vpop.f32.mrf.mxu0
        %v1494 = vadd.f32 0.0, %v1493
        %v1495 = vpop.f32.mrf.mxu0
        %v1496 = vadd.f32 0.0, %v1495
        %1497 = vmatmul.bf16.gmra.mxu0 %v965
        %v1498 = vpop.f32.mrf.mxu0
        %v1499 = vadd.f32 0.0, %v1498
        %v1500 = vpop.f32.mrf.mxu0
        %v1501 = vadd.f32 0.0, %v1500
        %1502 = vmatmul.bf16.gmra.mxu0 %v968
        %v1503 = vpop.f32.mrf.mxu0
        %v1504 = vadd.f32 0.0, %v1503
        %v1505 = vpop.f32.mrf.mxu0
        %v1506 = vadd.f32 0.0, %v1505
        %1507 = vmatmul.bf16.gmra.mxu0 %v971
        %v1508 = vpop.f32.mrf.mxu0
        %v1509 = vadd.f32 0.0, %v1508
        %v1510 = vpop.f32.mrf.mxu0
        %v1511 = vadd.f32 0.0, %v1510
        %1512 = vmatmul.bf16.gmra.mxu0 %v974
        %v1513 = vpop.f32.mrf.mxu0
        %v1514 = vadd.f32 0.0, %v1513
        %v1515 = vpop.f32.mrf.mxu0
        %v1516 = vadd.f32 0.0, %v1515
        %1517 = vmatmul.bf16.gmra.mxu0 %v1429
        %v1518 = vpop.f32.mrf.mxu0
        %v1519 = vadd.f32 0.0, %v1518
        %v1520 = vpop.f32.mrf.mxu0
        %v1521 = vadd.f32 0.0, %v1520
        %1522 = vdwg.mxu0
        %v1523 = vadd.f32 %v1389, %v1444
        %v1524 = vadd.f32 %v1390, %v1446
        %v1525 = vadd.f32 %v1391, %v1449
        %v1526 = vadd.f32 %v1392, %v1451
        %v1527 = vadd.f32 %v1393, %v1454
        %v1528 = vadd.f32 %v1394, %v1456
        %v1529 = vadd.f32 %v1395, %v1459
        %v1530 = vadd.f32 %v1396, %v1461
        %v1531 = vadd.f32 %v1397, %v1464
        %v1532 = vadd.f32 %v1398, %v1466
        %v1533 = vadd.f32 %v1399, %v1469
        %v1534 = vadd.f32 %v1400, %v1471
        %v1535 = vadd.f32 %v1401, %v1474
        %v1536 = vadd.f32 %v1402, %v1476
        %v1537 = vadd.f32 %v1403, %v1479
        %v1538 = vadd.f32 %v1404, %v1481
        %v1539 = vadd.f32 %v1405, %v1484
        %v1540 = vadd.f32 %v1406, %v1486
        %v1541 = vadd.f32 %v1407, %v1489
        %v1542 = vadd.f32 %v1408, %v1491
        %v1543 = vadd.f32 %v1409, %v1494
        %v1544 = vadd.f32 %v1410, %v1496
        %v1545 = vadd.f32 %v1411, %v1499
        %v1546 = vadd.f32 %v1412, %v1501
        %v1547 = vadd.f32 %v1413, %v1504
        %v1548 = vadd.f32 %v1414, %v1506
        %v1549 = vadd.f32 %v1415, %v1509
        %v1550 = vadd.f32 %v1416, %v1511
        %v1551 = vadd.f32 %v1417, %v1514
        %v1552 = vadd.f32 %v1418, %v1516
        %v1553 = vadd.f32 %v1419, %v1519
        %v1554 = vadd.f32 %v1420, %v1521
        %v1556 = vshrl.u32 %v262, 16
        %v1558 = vrot.slane %v1556, 4
        %v1559 = vshll.u32 %v262, 16
        %v1561 = vrot.slane %v1559, 5
        %v1562 = vor.u32 %v1558, %v1561
        %v1563 = vrot.slane %v1562, 4
        %v1565 = vshll.u32 %v263, 16
        %v1567 = vrot.slane %v1565, 5
        %v1568 = vsel %vm271, %v1563, %v1567
        %v1569 = vshrl.u32 %v263, 16
        %v1571 = vrot.slane %v1569, 4
        %v1572 = vor.u32 %v1571, %v1567
        %v1573 = vrot.slane %v1572, 4
        %v1575 = vshll.u32 %v264, 16
        %v1577 = vrot.slane %v1575, 5
        %v1578 = vsel %vm271, %v1573, %v1577
        %s1579 = scalar_lea.vmem %s212, 8
        %v1580 = vld [vmem:[%s1579] sm:$0x3]
        %v1581 = vunpack.c.l.b16 %v1568
        %v1582 = vunpack.c.l.b16 %v1578
        %v1583 = vpack.c.b16 %v1582, %v1581
        %v1585 = vsel %vm706, %v1583, 0
        %v1588 = vsel %vm755, %v1580, 0
        %1590 = vmatpush.bf16.msra.mxu0 0
        %1591 = vmatpush.bf16.msra.mxu0 0
        %1592 = vmatpush.bf16.msra.mxu0 0
        %1593 = vmatpush.bf16.msra.mxu0 0
        %1594 = vmatpush.bf16.msra.mxu0 0
        %1595 = vmatpush.bf16.msra.mxu0 0
        %1596 = vmatpush.bf16.msra.mxu0 0
        %1597 = vmatpush.bf16.msra.mxu0 %v1588
        %1598 = vmatmul.bf16.gmra.mxu0 %v711
        %v1599 = vpop.f32.mrf.mxu0
        %v1600 = vadd.f32 0.0, %v1599
        %v1601 = vpop.f32.mrf.mxu0
        %v1602 = vadd.f32 0.0, %v1601
        %1603 = vmatmul.bf16.gmra.mxu0 %v714
        %v1604 = vpop.f32.mrf.mxu0
        %v1605 = vadd.f32 0.0, %v1604
        %v1606 = vpop.f32.mrf.mxu0
        %v1607 = vadd.f32 0.0, %v1606
        %1608 = vmatmul.bf16.gmra.mxu0 %v717
        %v1609 = vpop.f32.mrf.mxu0
        %v1610 = vadd.f32 0.0, %v1609
        %v1611 = vpop.f32.mrf.mxu0
        %v1612 = vadd.f32 0.0, %v1611
        %1613 = vmatmul.bf16.gmra.mxu0 %v720
        %v1614 = vpop.f32.mrf.mxu0
        %v1615 = vadd.f32 0.0, %v1614
        %v1616 = vpop.f32.mrf.mxu0
        %v1617 = vadd.f32 0.0, %v1616
        %1618 = vmatmul.bf16.gmra.mxu0 %v723
        %v1619 = vpop.f32.mrf.mxu0
        %v1620 = vadd.f32 0.0, %v1619
        %v1621 = vpop.f32.mrf.mxu0
        %v1622 = vadd.f32 0.0, %v1621
        %1623 = vmatmul.bf16.gmra.mxu0 %v726
        %v1624 = vpop.f32.mrf.mxu0
        %v1625 = vadd.f32 0.0, %v1624
        %v1626 = vpop.f32.mrf.mxu0
        %v1627 = vadd.f32 0.0, %v1626
        %1628 = vmatmul.bf16.gmra.mxu0 %v729
        %v1629 = vpop.f32.mrf.mxu0
        %v1630 = vadd.f32 0.0, %v1629
        %v1631 = vpop.f32.mrf.mxu0
        %v1632 = vadd.f32 0.0, %v1631
        %1633 = vmatmul.bf16.gmra.mxu0 %v732
        %v1634 = vpop.f32.mrf.mxu0
        %v1635 = vadd.f32 0.0, %v1634
        %v1636 = vpop.f32.mrf.mxu0
        %v1637 = vadd.f32 0.0, %v1636
        %1638 = vmatmul.bf16.gmra.mxu0 %v735
        %v1639 = vpop.f32.mrf.mxu0
        %v1640 = vadd.f32 0.0, %v1639
        %v1641 = vpop.f32.mrf.mxu0
        %v1642 = vadd.f32 0.0, %v1641
        %1643 = vmatmul.bf16.gmra.mxu0 %v738
        %v1644 = vpop.f32.mrf.mxu0
        %v1645 = vadd.f32 0.0, %v1644
        %v1646 = vpop.f32.mrf.mxu0
        %v1647 = vadd.f32 0.0, %v1646
        %1648 = vmatmul.bf16.gmra.mxu0 %v741
        %v1649 = vpop.f32.mrf.mxu0
        %v1650 = vadd.f32 0.0, %v1649
        %v1651 = vpop.f32.mrf.mxu0
        %v1652 = vadd.f32 0.0, %v1651
        %1653 = vmatmul.bf16.gmra.mxu0 %v744
        %v1654 = vpop.f32.mrf.mxu0
        %v1655 = vadd.f32 0.0, %v1654
        %v1656 = vpop.f32.mrf.mxu0
        %v1657 = vadd.f32 0.0, %v1656
        %1658 = vmatmul.bf16.gmra.mxu0 %v747
        %v1659 = vpop.f32.mrf.mxu0
        %v1660 = vadd.f32 0.0, %v1659
        %v1661 = vpop.f32.mrf.mxu0
        %v1662 = vadd.f32 0.0, %v1661
        %1663 = vmatmul.bf16.gmra.mxu0 %v750
        %v1664 = vpop.f32.mrf.mxu0
        %v1665 = vadd.f32 0.0, %v1664
        %v1666 = vpop.f32.mrf.mxu0
        %v1667 = vadd.f32 0.0, %v1666
        %1668 = vmatmul.bf16.gmra.mxu0 %v753
        %v1669 = vpop.f32.mrf.mxu0
        %v1670 = vadd.f32 0.0, %v1669
        %v1671 = vpop.f32.mrf.mxu0
        %v1672 = vadd.f32 0.0, %v1671
        %1673 = vmatmul.bf16.gmra.mxu0 %v1585
        %v1674 = vpop.f32.mrf.mxu0
        %v1675 = vadd.f32 0.0, %v1674
        %v1676 = vpop.f32.mrf.mxu0
        %v1677 = vadd.f32 0.0, %v1676
        %1678 = vdwg.mxu0
        %v1679 = vadd.f32 %v1523, %v1600
        %v1680 = vadd.f32 %v1524, %v1602
        %v1681 = vadd.f32 %v1525, %v1605
        %v1682 = vadd.f32 %v1526, %v1607
        %v1683 = vadd.f32 %v1527, %v1610
        %v1684 = vadd.f32 %v1528, %v1612
        %v1685 = vadd.f32 %v1529, %v1615
        %v1686 = vadd.f32 %v1530, %v1617
        %v1687 = vadd.f32 %v1531, %v1620
        %v1688 = vadd.f32 %v1532, %v1622
        %v1689 = vadd.f32 %v1533, %v1625
        %v1690 = vadd.f32 %v1534, %v1627
        %v1691 = vadd.f32 %v1535, %v1630
        %v1692 = vadd.f32 %v1536, %v1632
        %v1693 = vadd.f32 %v1537, %v1635
        %v1694 = vadd.f32 %v1538, %v1637
        %v1695 = vadd.f32 %v1539, %v1640
        %v1696 = vadd.f32 %v1540, %v1642
        %v1697 = vadd.f32 %v1541, %v1645
        %v1698 = vadd.f32 %v1542, %v1647
        %v1699 = vadd.f32 %v1543, %v1650
        %v1700 = vadd.f32 %v1544, %v1652
        %v1701 = vadd.f32 %v1545, %v1655
        %v1702 = vadd.f32 %v1546, %v1657
        %v1703 = vadd.f32 %v1547, %v1660
        %v1704 = vadd.f32 %v1548, %v1662
        %v1705 = vadd.f32 %v1549, %v1665
        %v1706 = vadd.f32 %v1550, %v1667
        %v1707 = vadd.f32 %v1551, %v1670
        %v1708 = vadd.f32 %v1552, %v1672
        %v1709 = vadd.f32 %v1553, %v1675
        %v1710 = vadd.f32 %v1554, %v1677
        %v1712 = vrot.slane %v262, 5
        %v1713 = vrot.slane %v1712, 4
        %v1714 = vrot.slane %v263, 5
        %v1715 = vsel %vm1086, %v1713, %v1714
        %v1716 = vrot.slane %v1714, 4
        %v1717 = vrot.slane %v264, 5
        %v1718 = vsel %vm1086, %v1716, %v1717
        %s1719 = scalar_lea.vmem %s212, 10
        %v1720 = vld [vmem:[%s1719] sm:$0x3]
        %v1721 = vunpack.c.l.b16 %v1715
        %v1722 = vunpack.c.l.b16 %v1718
        %v1723 = vpack.c.b16 %v1722, %v1721
        %v1725 = vsel %vm706, %v1723, 0
        %v1728 = vsel %vm755, %v1720, 0
        %1730 = vmatpush.bf16.msra.mxu0 0
        %1731 = vmatpush.bf16.msra.mxu0 0
        %1732 = vmatpush.bf16.msra.mxu0 0
        %1733 = vmatpush.bf16.msra.mxu0 0
        %1734 = vmatpush.bf16.msra.mxu0 0
        %1735 = vmatpush.bf16.msra.mxu0 0
        %1736 = vmatpush.bf16.msra.mxu0 0
        %1737 = vmatpush.bf16.msra.mxu0 %v1728
        %1738 = vmatmul.bf16.gmra.mxu0 %v1253
        %v1739 = vpop.f32.mrf.mxu0
        %v1740 = vadd.f32 0.0, %v1739
        %v1741 = vpop.f32.mrf.mxu0
        %v1742 = vadd.f32 0.0, %v1741
        %1743 = vmatmul.bf16.gmra.mxu0 %v1256
        %v1744 = vpop.f32.mrf.mxu0
        %v1745 = vadd.f32 0.0, %v1744
        %v1746 = vpop.f32.mrf.mxu0
        %v1747 = vadd.f32 0.0, %v1746
        %1748 = vmatmul.bf16.gmra.mxu0 %v1259
        %v1749 = vpop.f32.mrf.mxu0
        %v1750 = vadd.f32 0.0, %v1749
        %v1751 = vpop.f32.mrf.mxu0
        %v1752 = vadd.f32 0.0, %v1751
        %1753 = vmatmul.bf16.gmra.mxu0 %v1262
        %v1754 = vpop.f32.mrf.mxu0
        %v1755 = vadd.f32 0.0, %v1754
        %v1756 = vpop.f32.mrf.mxu0
        %v1757 = vadd.f32 0.0, %v1756
        %1758 = vmatmul.bf16.gmra.mxu0 %v1265
        %v1759 = vpop.f32.mrf.mxu0
        %v1760 = vadd.f32 0.0, %v1759
        %v1761 = vpop.f32.mrf.mxu0
        %v1762 = vadd.f32 0.0, %v1761
        %1763 = vmatmul.bf16.gmra.mxu0 %v1268
        %v1764 = vpop.f32.mrf.mxu0
        %v1765 = vadd.f32 0.0, %v1764
        %v1766 = vpop.f32.mrf.mxu0
        %v1767 = vadd.f32 0.0, %v1766
        %1768 = vmatmul.bf16.gmra.mxu0 %v1271
        %v1769 = vpop.f32.mrf.mxu0
        %v1770 = vadd.f32 0.0, %v1769
        %v1771 = vpop.f32.mrf.mxu0
        %v1772 = vadd.f32 0.0, %v1771
        %1773 = vmatmul.bf16.gmra.mxu0 %v1274
        %v1774 = vpop.f32.mrf.mxu0
        %v1775 = vadd.f32 0.0, %v1774
        %v1776 = vpop.f32.mrf.mxu0
        %v1777 = vadd.f32 0.0, %v1776
        %1778 = vmatmul.bf16.gmra.mxu0 %v1277
        %v1779 = vpop.f32.mrf.mxu0
        %v1780 = vadd.f32 0.0, %v1779
        %v1781 = vpop.f32.mrf.mxu0
        %v1782 = vadd.f32 0.0, %v1781
        %1783 = vmatmul.bf16.gmra.mxu0 %v1280
        %v1784 = vpop.f32.mrf.mxu0
        %v1785 = vadd.f32 0.0, %v1784
        %v1786 = vpop.f32.mrf.mxu0
        %v1787 = vadd.f32 0.0, %v1786
        %1788 = vmatmul.bf16.gmra.mxu0 %v1283
        %v1789 = vpop.f32.mrf.mxu0
        %v1790 = vadd.f32 0.0, %v1789
        %v1791 = vpop.f32.mrf.mxu0
        %v1792 = vadd.f32 0.0, %v1791
        %1793 = vmatmul.bf16.gmra.mxu0 %v1286
        %v1794 = vpop.f32.mrf.mxu0
        %v1795 = vadd.f32 0.0, %v1794
        %v1796 = vpop.f32.mrf.mxu0
        %v1797 = vadd.f32 0.0, %v1796
        %1798 = vmatmul.bf16.gmra.mxu0 %v1289
        %v1799 = vpop.f32.mrf.mxu0
        %v1800 = vadd.f32 0.0, %v1799
        %v1801 = vpop.f32.mrf.mxu0
        %v1802 = vadd.f32 0.0, %v1801
        %1803 = vmatmul.bf16.gmra.mxu0 %v1292
        %v1804 = vpop.f32.mrf.mxu0
        %v1805 = vadd.f32 0.0, %v1804
        %v1806 = vpop.f32.mrf.mxu0
        %v1807 = vadd.f32 0.0, %v1806
        %1808 = vmatmul.bf16.gmra.mxu0 %v1295
        %v1809 = vpop.f32.mrf.mxu0
        %v1810 = vadd.f32 0.0, %v1809
        %v1811 = vpop.f32.mrf.mxu0
        %v1812 = vadd.f32 0.0, %v1811
        %1813 = vmatmul.bf16.gmra.mxu0 %v1725
        %v1814 = vpop.f32.mrf.mxu0
        %v1815 = vadd.f32 0.0, %v1814
        %v1816 = vpop.f32.mrf.mxu0
        %v1817 = vadd.f32 0.0, %v1816
        %1818 = vdwg.mxu0
        %v1819 = vadd.f32 %v1679, %v1740
        %v1820 = vadd.f32 %v1680, %v1742
        %v1821 = vadd.f32 %v1681, %v1745
        %v1822 = vadd.f32 %v1682, %v1747
        %v1823 = vadd.f32 %v1683, %v1750
        %v1824 = vadd.f32 %v1684, %v1752
        %v1825 = vadd.f32 %v1685, %v1755
        %v1826 = vadd.f32 %v1686, %v1757
        %v1827 = vadd.f32 %v1687, %v1760
        %v1828 = vadd.f32 %v1688, %v1762
        %v1829 = vadd.f32 %v1689, %v1765
        %v1830 = vadd.f32 %v1690, %v1767
        %v1831 = vadd.f32 %v1691, %v1770
        %v1832 = vadd.f32 %v1692, %v1772
        %v1833 = vadd.f32 %v1693, %v1775
        %v1834 = vadd.f32 %v1694, %v1777
        %v1835 = vadd.f32 %v1695, %v1780
        %v1836 = vadd.f32 %v1696, %v1782
        %v1837 = vadd.f32 %v1697, %v1785
        %v1838 = vadd.f32 %v1698, %v1787
        %v1839 = vadd.f32 %v1699, %v1790
        %v1840 = vadd.f32 %v1700, %v1792
        %v1841 = vadd.f32 %v1701, %v1795
        %v1842 = vadd.f32 %v1702, %v1797
        %v1843 = vadd.f32 %v1703, %v1800
        %v1844 = vadd.f32 %v1704, %v1802
        %v1845 = vadd.f32 %v1705, %v1805
        %v1846 = vadd.f32 %v1706, %v1807
        %v1847 = vadd.f32 %v1707, %v1810
        %v1848 = vadd.f32 %v1708, %v1812
        %v1849 = vadd.f32 %v1709, %v1815
        %v1850 = vadd.f32 %v1710, %v1817
        %s1851 = scalar_lea.vmem %s212, 12
        %v1852 = vld [vmem:[%s1851] sm:$0x3]
        %v1855 = vunpack.c.l.b16 %v265
        %v1856 = vunpack.c.l.b16 %v266
        %v1857 = vpack.c.b16 %v1856, %v1855
        %v1859 = vsel %vm706, %v1857, 0
        %v1862 = vsel %vm755, %v1852, 0
        %1864 = vmatpush.bf16.msra.mxu0 0
        %1865 = vmatpush.bf16.msra.mxu0 0
        %1866 = vmatpush.bf16.msra.mxu0 0
        %1867 = vmatpush.bf16.msra.mxu0 0
        %1868 = vmatpush.bf16.msra.mxu0 0
        %1869 = vmatpush.bf16.msra.mxu0 0
        %1870 = vmatpush.bf16.msra.mxu0 0
        %1871 = vmatpush.bf16.msra.mxu0 %v1862
        %1872 = vmatmul.bf16.gmra.mxu0 %v935
        %v1873 = vpop.f32.mrf.mxu0
        %v1874 = vadd.f32 0.0, %v1873
        %v1875 = vpop.f32.mrf.mxu0
        %v1876 = vadd.f32 0.0, %v1875
        %1877 = vmatmul.bf16.gmra.mxu0 %v938
        %v1878 = vpop.f32.mrf.mxu0
        %v1879 = vadd.f32 0.0, %v1878
        %v1880 = vpop.f32.mrf.mxu0
        %v1881 = vadd.f32 0.0, %v1880
        %1882 = vmatmul.bf16.gmra.mxu0 %v941
        %v1883 = vpop.f32.mrf.mxu0
        %v1884 = vadd.f32 0.0, %v1883
        %v1885 = vpop.f32.mrf.mxu0
        %v1886 = vadd.f32 0.0, %v1885
        %1887 = vmatmul.bf16.gmra.mxu0 %v944
        %v1888 = vpop.f32.mrf.mxu0
        %v1889 = vadd.f32 0.0, %v1888
        %v1890 = vpop.f32.mrf.mxu0
        %v1891 = vadd.f32 0.0, %v1890
        %1892 = vmatmul.bf16.gmra.mxu0 %v947
        %v1893 = vpop.f32.mrf.mxu0
        %v1894 = vadd.f32 0.0, %v1893
        %v1895 = vpop.f32.mrf.mxu0
        %v1896 = vadd.f32 0.0, %v1895
        %1897 = vmatmul.bf16.gmra.mxu0 %v950
        %v1898 = vpop.f32.mrf.mxu0
        %v1899 = vadd.f32 0.0, %v1898
        %v1900 = vpop.f32.mrf.mxu0
        %v1901 = vadd.f32 0.0, %v1900
        %1902 = vmatmul.bf16.gmra.mxu0 %v953
        %v1903 = vpop.f32.mrf.mxu0
        %v1904 = vadd.f32 0.0, %v1903
        %v1905 = vpop.f32.mrf.mxu0
        %v1906 = vadd.f32 0.0, %v1905
        %1907 = vmatmul.bf16.gmra.mxu0 %v956
        %v1908 = vpop.f32.mrf.mxu0
        %v1909 = vadd.f32 0.0, %v1908
        %v1910 = vpop.f32.mrf.mxu0
        %v1911 = vadd.f32 0.0, %v1910
        %1912 = vmatmul.bf16.gmra.mxu0 %v959
        %v1913 = vpop.f32.mrf.mxu0
        %v1914 = vadd.f32 0.0, %v1913
        %v1915 = vpop.f32.mrf.mxu0
        %v1916 = vadd.f32 0.0, %v1915
        %1917 = vmatmul.bf16.gmra.mxu0 %v962
        %v1918 = vpop.f32.mrf.mxu0
        %v1919 = vadd.f32 0.0, %v1918
        %v1920 = vpop.f32.mrf.mxu0
        %v1921 = vadd.f32 0.0, %v1920
        %1922 = vmatmul.bf16.gmra.mxu0 %v965
        %v1923 = vpop.f32.mrf.mxu0
        %v1924 = vadd.f32 0.0, %v1923
        %v1925 = vpop.f32.mrf.mxu0
        %v1926 = vadd.f32 0.0, %v1925
        %1927 = vmatmul.bf16.gmra.mxu0 %v968
        %v1928 = vpop.f32.mrf.mxu0
        %v1929 = vadd.f32 0.0, %v1928
        %v1930 = vpop.f32.mrf.mxu0
        %v1931 = vadd.f32 0.0, %v1930
        %1932 = vmatmul.bf16.gmra.mxu0 %v971
        %v1933 = vpop.f32.mrf.mxu0
        %v1934 = vadd.f32 0.0, %v1933
        %v1935 = vpop.f32.mrf.mxu0
        %v1936 = vadd.f32 0.0, %v1935
        %1937 = vmatmul.bf16.gmra.mxu0 %v974
        %v1938 = vpop.f32.mrf.mxu0
        %v1939 = vadd.f32 0.0, %v1938
        %v1940 = vpop.f32.mrf.mxu0
        %v1941 = vadd.f32 0.0, %v1940
        %1942 = vmatmul.bf16.gmra.mxu0 %v1429
        %v1943 = vpop.f32.mrf.mxu0
        %v1944 = vadd.f32 0.0, %v1943
        %v1945 = vpop.f32.mrf.mxu0
        %v1946 = vadd.f32 0.0, %v1945
        %1947 = vmatmul.bf16.gmra.mxu0 %v1859
        %v1948 = vpop.f32.mrf.mxu0
        %v1949 = vadd.f32 0.0, %v1948
        %v1950 = vpop.f32.mrf.mxu0
        %v1951 = vadd.f32 0.0, %v1950
        %1952 = vdwg.mxu0
        %v1953 = vadd.f32 %v1819, %v1874
        %v1954 = vadd.f32 %v1820, %v1876
        %v1955 = vadd.f32 %v1821, %v1879
        %v1956 = vadd.f32 %v1822, %v1881
        %v1957 = vadd.f32 %v1823, %v1884
        %v1958 = vadd.f32 %v1824, %v1886
        %v1959 = vadd.f32 %v1825, %v1889
        %v1960 = vadd.f32 %v1826, %v1891
        %v1961 = vadd.f32 %v1827, %v1894
        %v1962 = vadd.f32 %v1828, %v1896
        %v1963 = vadd.f32 %v1829, %v1899
        %v1964 = vadd.f32 %v1830, %v1901
        %v1965 = vadd.f32 %v1831, %v1904
        %v1966 = vadd.f32 %v1832, %v1906
        %v1967 = vadd.f32 %v1833, %v1909
        %v1968 = vadd.f32 %v1834, %v1911
        %v1969 = vadd.f32 %v1835, %v1914
        %v1970 = vadd.f32 %v1836, %v1916
        %v1971 = vadd.f32 %v1837, %v1919
        %v1972 = vadd.f32 %v1838, %v1921
        %v1973 = vadd.f32 %v1839, %v1924
        %v1974 = vadd.f32 %v1840, %v1926
        %v1975 = vadd.f32 %v1841, %v1929
        %v1976 = vadd.f32 %v1842, %v1931
        %v1977 = vadd.f32 %v1843, %v1934
        %v1978 = vadd.f32 %v1844, %v1936
        %v1979 = vadd.f32 %v1845, %v1939
        %v1980 = vadd.f32 %v1846, %v1941
        %v1981 = vadd.f32 %v1847, %v1944
        %v1982 = vadd.f32 %v1848, %v1946
        %v1983 = vadd.f32 %v1849, %v1949
        %v1984 = vadd.f32 %v1850, %v1951
        %v1986 = vshrl.u32 %v265, 16
        %v1988 = vrot.slane %v1986, 4
        %v1989 = vshll.u32 %v265, 16
        %v1991 = vrot.slane %v1989, 5
        %v1992 = vor.u32 %v1988, %v1991
        %v1993 = vrot.slane %v1992, 4
        %v1995 = vshll.u32 %v266, 16
        %v1997 = vrot.slane %v1995, 5
        %v1998 = vsel %vm271, %v1993, %v1997
        %v1999 = vshrl.u32 %v266, 16
        %v2001 = vrot.slane %v1999, 4
        %v2002 = vor.u32 %v2001, %v1997
        %v2003 = vrot.slane %v2002, 4
        %v2005 = vshll.u32 %v267, 16
        %v2007 = vrot.slane %v2005, 5
        %v2008 = vsel %vm271, %v2003, %v2007
        %s2009 = scalar_lea.vmem %s212, 14
        %v2010 = vld [vmem:[%s2009] sm:$0x3]
        %v2011 = vunpack.c.l.b16 %v1998
        %v2012 = vunpack.c.l.b16 %v2008
        %v2013 = vpack.c.b16 %v2012, %v2011
        %v2015 = vsel %vm706, %v2013, 0
        %v2018 = vsel %vm755, %v2010, 0
        %2020 = vmatpush.bf16.msra.mxu0 0
        %2021 = vmatpush.bf16.msra.mxu0 0
        %2022 = vmatpush.bf16.msra.mxu0 0
        %2023 = vmatpush.bf16.msra.mxu0 0
        %2024 = vmatpush.bf16.msra.mxu0 0
        %2025 = vmatpush.bf16.msra.mxu0 0
        %2026 = vmatpush.bf16.msra.mxu0 0
        %2027 = vmatpush.bf16.msra.mxu0 %v2018
        %2028 = vmatmul.bf16.gmra.mxu0 %v714
        %v2029 = vpop.f32.mrf.mxu0
        %v2030 = vadd.f32 0.0, %v2029
        %v2031 = vpop.f32.mrf.mxu0
        %v2032 = vadd.f32 0.0, %v2031
        %2033 = vmatmul.bf16.gmra.mxu0 %v717
        %v2034 = vpop.f32.mrf.mxu0
        %v2035 = vadd.f32 0.0, %v2034
        %v2036 = vpop.f32.mrf.mxu0
        %v2037 = vadd.f32 0.0, %v2036
        %2038 = vmatmul.bf16.gmra.mxu0 %v720
        %v2039 = vpop.f32.mrf.mxu0
        %v2040 = vadd.f32 0.0, %v2039
        %v2041 = vpop.f32.mrf.mxu0
        %v2042 = vadd.f32 0.0, %v2041
        %2043 = vmatmul.bf16.gmra.mxu0 %v723
        %v2044 = vpop.f32.mrf.mxu0
        %v2045 = vadd.f32 0.0, %v2044
        %v2046 = vpop.f32.mrf.mxu0
        %v2047 = vadd.f32 0.0, %v2046
        %2048 = vmatmul.bf16.gmra.mxu0 %v726
        %v2049 = vpop.f32.mrf.mxu0
        %v2050 = vadd.f32 0.0, %v2049
        %v2051 = vpop.f32.mrf.mxu0
        %v2052 = vadd.f32 0.0, %v2051
        %2053 = vmatmul.bf16.gmra.mxu0 %v729
        %v2054 = vpop.f32.mrf.mxu0
        %v2055 = vadd.f32 0.0, %v2054
        %v2056 = vpop.f32.mrf.mxu0
        %v2057 = vadd.f32 0.0, %v2056
        %2058 = vmatmul.bf16.gmra.mxu0 %v732
        %v2059 = vpop.f32.mrf.mxu0
        %v2060 = vadd.f32 0.0, %v2059
        %v2061 = vpop.f32.mrf.mxu0
        %v2062 = vadd.f32 0.0, %v2061
        %2063 = vmatmul.bf16.gmra.mxu0 %v735
        %v2064 = vpop.f32.mrf.mxu0
        %v2065 = vadd.f32 0.0, %v2064
        %v2066 = vpop.f32.mrf.mxu0
        %v2067 = vadd.f32 0.0, %v2066
        %2068 = vmatmul.bf16.gmra.mxu0 %v738
        %v2069 = vpop.f32.mrf.mxu0
        %v2070 = vadd.f32 0.0, %v2069
        %v2071 = vpop.f32.mrf.mxu0
        %v2072 = vadd.f32 0.0, %v2071
        %2073 = vmatmul.bf16.gmra.mxu0 %v741
        %v2074 = vpop.f32.mrf.mxu0
        %v2075 = vadd.f32 0.0, %v2074
        %v2076 = vpop.f32.mrf.mxu0
        %v2077 = vadd.f32 0.0, %v2076
        %2078 = vmatmul.bf16.gmra.mxu0 %v744
        %v2079 = vpop.f32.mrf.mxu0
        %v2080 = vadd.f32 0.0, %v2079
        %v2081 = vpop.f32.mrf.mxu0
        %v2082 = vadd.f32 0.0, %v2081
        %2083 = vmatmul.bf16.gmra.mxu0 %v747
        %v2084 = vpop.f32.mrf.mxu0
        %v2085 = vadd.f32 0.0, %v2084
        %v2086 = vpop.f32.mrf.mxu0
        %v2087 = vadd.f32 0.0, %v2086
        %2088 = vmatmul.bf16.gmra.mxu0 %v750
        %v2089 = vpop.f32.mrf.mxu0
        %v2090 = vadd.f32 0.0, %v2089
        %v2091 = vpop.f32.mrf.mxu0
        %v2092 = vadd.f32 0.0, %v2091
        %2093 = vmatmul.bf16.gmra.mxu0 %v753
        %v2094 = vpop.f32.mrf.mxu0
        %v2095 = vadd.f32 0.0, %v2094
        %v2096 = vpop.f32.mrf.mxu0
        %v2097 = vadd.f32 0.0, %v2096
        %2098 = vmatmul.bf16.gmra.mxu0 %v1585
        %v2099 = vpop.f32.mrf.mxu0
        %v2100 = vadd.f32 0.0, %v2099
        %v2101 = vpop.f32.mrf.mxu0
        %v2102 = vadd.f32 0.0, %v2101
        %2103 = vmatmul.bf16.gmra.mxu0 %v2015
        %v2104 = vpop.f32.mrf.mxu0
        %v2105 = vadd.f32 0.0, %v2104
        %v2106 = vpop.f32.mrf.mxu0
        %v2107 = vadd.f32 0.0, %v2106
        %2108 = vdwg.mxu0
        %v2109 = vadd.f32 %v1953, %v2030
        %v2110 = vadd.f32 %v1954, %v2032
        %v2111 = vadd.f32 %v1955, %v2035
        %v2112 = vadd.f32 %v1956, %v2037
        %v2113 = vadd.f32 %v1957, %v2040
        %v2114 = vadd.f32 %v1958, %v2042
        %v2115 = vadd.f32 %v1959, %v2045
        %v2116 = vadd.f32 %v1960, %v2047
        %v2117 = vadd.f32 %v1961, %v2050
        %v2118 = vadd.f32 %v1962, %v2052
        %v2119 = vadd.f32 %v1963, %v2055
        %v2120 = vadd.f32 %v1964, %v2057
        %v2121 = vadd.f32 %v1965, %v2060
        %v2122 = vadd.f32 %v1966, %v2062
        %v2123 = vadd.f32 %v1967, %v2065
        %v2124 = vadd.f32 %v1968, %v2067
        %v2125 = vadd.f32 %v1969, %v2070
        %v2126 = vadd.f32 %v1970, %v2072
        %v2127 = vadd.f32 %v1971, %v2075
        %v2128 = vadd.f32 %v1972, %v2077
        %v2129 = vadd.f32 %v1973, %v2080
        %v2130 = vadd.f32 %v1974, %v2082
        %v2131 = vadd.f32 %v1975, %v2085
        %v2132 = vadd.f32 %v1976, %v2087
        %v2133 = vadd.f32 %v1977, %v2090
        %v2134 = vadd.f32 %v1978, %v2092
        %v2135 = vadd.f32 %v1979, %v2095
        %v2136 = vadd.f32 %v1980, %v2097
        %v2137 = vadd.f32 %v1981, %v2100
        %v2138 = vadd.f32 %v1982, %v2102
        %v2139 = vadd.f32 %v1983, %v2105
        %v2140 = vadd.f32 %v1984, %v2107
        %v2142 = vrot.slane %v265, 5
        %v2143 = vrot.slane %v2142, 4
        %v2144 = vrot.slane %v266, 5
        %v2145 = vsel %vm1086, %v2143, %v2144
        %v2146 = vrot.slane %v2144, 4
        %v2147 = vrot.slane %v267, 5
        %v2148 = vsel %vm1086, %v2146, %v2147
        %s2149 = scalar_lea.vmem %s212, 16
        %v2150 = vld [vmem:[%s2149] sm:$0x3]
        %v2151 = vunpack.c.l.b16 %v2145
        %v2152 = vunpack.c.l.b16 %v2148
        %v2153 = vpack.c.b16 %v2152, %v2151
        %v2155 = vsel %vm706, %v2153, 0
        %v2158 = vsel %vm755, %v2150, 0
        %2160 = vmatpush.bf16.msra.mxu0 0
        %2161 = vmatpush.bf16.msra.mxu0 0
        %2162 = vmatpush.bf16.msra.mxu0 0
        %2163 = vmatpush.bf16.msra.mxu0 0
        %2164 = vmatpush.bf16.msra.mxu0 0
        %2165 = vmatpush.bf16.msra.mxu0 0
        %2166 = vmatpush.bf16.msra.mxu0 0
        %2167 = vmatpush.bf16.msra.mxu0 %v2158
        %2168 = vmatmul.bf16.gmra.mxu0 %v1256
        %v2169 = vpop.f32.mrf.mxu0
        %v2170 = vadd.f32 0.0, %v2169
        %v2171 = vpop.f32.mrf.mxu0
        %v2172 = vadd.f32 0.0, %v2171
        %2173 = vmatmul.bf16.gmra.mxu0 %v1259
        %v2174 = vpop.f32.mrf.mxu0
        %v2175 = vadd.f32 0.0, %v2174
        %v2176 = vpop.f32.mrf.mxu0
        %v2177 = vadd.f32 0.0, %v2176
        %2178 = vmatmul.bf16.gmra.mxu0 %v1262
        %v2179 = vpop.f32.mrf.mxu0
        %v2180 = vadd.f32 0.0, %v2179
        %v2181 = vpop.f32.mrf.mxu0
        %v2182 = vadd.f32 0.0, %v2181
        %2183 = vmatmul.bf16.gmra.mxu0 %v1265
        %v2184 = vpop.f32.mrf.mxu0
        %v2185 = vadd.f32 0.0, %v2184
        %v2186 = vpop.f32.mrf.mxu0
        %v2187 = vadd.f32 0.0, %v2186
        %2188 = vmatmul.bf16.gmra.mxu0 %v1268
        %v2189 = vpop.f32.mrf.mxu0
        %v2190 = vadd.f32 0.0, %v2189
        %v2191 = vpop.f32.mrf.mxu0
        %v2192 = vadd.f32 0.0, %v2191
        %2193 = vmatmul.bf16.gmra.mxu0 %v1271
        %v2194 = vpop.f32.mrf.mxu0
        %v2195 = vadd.f32 0.0, %v2194
        %v2196 = vpop.f32.mrf.mxu0
        %v2197 = vadd.f32 0.0, %v2196
        %2198 = vmatmul.bf16.gmra.mxu0 %v1274
        %v2199 = vpop.f32.mrf.mxu0
        %v2200 = vadd.f32 0.0, %v2199
        %v2201 = vpop.f32.mrf.mxu0
        %v2202 = vadd.f32 0.0, %v2201
        %2203 = vmatmul.bf16.gmra.mxu0 %v1277
        %v2204 = vpop.f32.mrf.mxu0
        %v2205 = vadd.f32 0.0, %v2204
        %v2206 = vpop.f32.mrf.mxu0
        %v2207 = vadd.f32 0.0, %v2206
        %2208 = vmatmul.bf16.gmra.mxu0 %v1280
        %v2209 = vpop.f32.mrf.mxu0
        %v2210 = vadd.f32 0.0, %v2209
        %v2211 = vpop.f32.mrf.mxu0
        %v2212 = vadd.f32 0.0, %v2211
        %2213 = vmatmul.bf16.gmra.mxu0 %v1283
        %v2214 = vpop.f32.mrf.mxu0
        %v2215 = vadd.f32 0.0, %v2214
        %v2216 = vpop.f32.mrf.mxu0
        %v2217 = vadd.f32 0.0, %v2216
        %2218 = vmatmul.bf16.gmra.mxu0 %v1286
        %v2219 = vpop.f32.mrf.mxu0
        %v2220 = vadd.f32 0.0, %v2219
        %v2221 = vpop.f32.mrf.mxu0
        %v2222 = vadd.f32 0.0, %v2221
        %2223 = vmatmul.bf16.gmra.mxu0 %v1289
        %v2224 = vpop.f32.mrf.mxu0
        %v2225 = vadd.f32 0.0, %v2224
        %v2226 = vpop.f32.mrf.mxu0
        %v2227 = vadd.f32 0.0, %v2226
        %2228 = vmatmul.bf16.gmra.mxu0 %v1292
        %v2229 = vpop.f32.mrf.mxu0
        %v2230 = vadd.f32 0.0, %v2229
        %v2231 = vpop.f32.mrf.mxu0
        %v2232 = vadd.f32 0.0, %v2231
        %2233 = vmatmul.bf16.gmra.mxu0 %v1295
        %v2234 = vpop.f32.mrf.mxu0
        %v2235 = vadd.f32 0.0, %v2234
        %v2236 = vpop.f32.mrf.mxu0
        %v2237 = vadd.f32 0.0, %v2236
        %2238 = vmatmul.bf16.gmra.mxu0 %v1725
        %v2239 = vpop.f32.mrf.mxu0
        %v2240 = vadd.f32 0.0, %v2239
        %v2241 = vpop.f32.mrf.mxu0
        %v2242 = vadd.f32 0.0, %v2241
        %2243 = vmatmul.bf16.gmra.mxu0 %v2155
        %v2244 = vpop.f32.mrf.mxu0
        %v2245 = vadd.f32 0.0, %v2244
        %v2246 = vpop.f32.mrf.mxu0
        %v2247 = vadd.f32 0.0, %v2246
        %2248 = vdwg.mxu0
        %v2249 = vadd.f32 %v2109, %v2170
        %v2250 = vadd.f32 %v2110, %v2172
        %v2251 = vadd.f32 %v2111, %v2175
        %v2252 = vadd.f32 %v2112, %v2177
        %v2253 = vadd.f32 %v2113, %v2180
        %v2254 = vadd.f32 %v2114, %v2182
        %v2255 = vadd.f32 %v2115, %v2185
        %v2256 = vadd.f32 %v2116, %v2187
        %v2257 = vadd.f32 %v2117, %v2190
        %v2258 = vadd.f32 %v2118, %v2192
        %v2259 = vadd.f32 %v2119, %v2195
        %v2260 = vadd.f32 %v2120, %v2197
        %v2261 = vadd.f32 %v2121, %v2200
        %v2262 = vadd.f32 %v2122, %v2202
        %v2263 = vadd.f32 %v2123, %v2205
        %v2264 = vadd.f32 %v2124, %v2207
        %v2265 = vadd.f32 %v2125, %v2210
        %v2266 = vadd.f32 %v2126, %v2212
        %v2267 = vadd.f32 %v2127, %v2215
        %v2268 = vadd.f32 %v2128, %v2217
        %v2269 = vadd.f32 %v2129, %v2220
        %v2270 = vadd.f32 %v2130, %v2222
        %v2271 = vadd.f32 %v2131, %v2225
        %v2272 = vadd.f32 %v2132, %v2227
        %v2273 = vadd.f32 %v2133, %v2230
        %v2274 = vadd.f32 %v2134, %v2232
        %v2275 = vadd.f32 %v2135, %v2235
        %v2276 = vadd.f32 %v2136, %v2237
        %v2277 = vadd.f32 %v2137, %v2240
        %v2278 = vadd.f32 %v2138, %v2242
        %v2279 = vadd.f32 %v2139, %v2245
        %v2280 = vadd.f32 %v2140, %v2247
        %2281 = vst [vmem:[#allocation2] sm:$0xff] %v2249
        %2282 = vst [vmem:[#allocation2 + $0x8] sm:$0xff] %v2250
        %2283 = vst [vmem:[#allocation2 + $0x10] sm:$0xff] %v2251
        %2284 = vst [vmem:[#allocation2 + $0x18] sm:$0xff] %v2252
        %2285 = vst [vmem:[#allocation2 + $0x20] sm:$0xff] %v2253
        %2286 = vst [vmem:[#allocation2 + $0x28] sm:$0xff] %v2254
        %2287 = vst [vmem:[#allocation2 + $0x30] sm:$0xff] %v2255
        %2288 = vst [vmem:[#allocation2 + $0x38] sm:$0xff] %v2256
        %2289 = vst [vmem:[#allocation2 + $0x40] sm:$0xff] %v2257
        %2290 = vst [vmem:[#allocation2 + $0x48] sm:$0xff] %v2258
        %2291 = vst [vmem:[#allocation2 + $0x50] sm:$0xff] %v2259
        %2292 = vst [vmem:[#allocation2 + $0x58] sm:$0xff] %v2260
        %2293 = vst [vmem:[#allocation2 + $0x60] sm:$0xff] %v2261
        %2294 = vst [vmem:[#allocation2 + $0x68] sm:$0xff] %v2262
        %2295 = vst [vmem:[#allocation2 + $0x70] sm:$0xff] %v2263
        %2296 = vst [vmem:[#allocation2 + $0x78] sm:$0xff] %v2264
        %2297 = vst [vmem:[#allocation2 + $0x80] sm:$0xff] %v2265
        %2298 = vst [vmem:[#allocation2 + $0x88] sm:$0xff] %v2266
        %2299 = vst [vmem:[#allocation2 + $0x90] sm:$0xff] %v2267
        %2300 = vst [vmem:[#allocation2 + $0x98] sm:$0xff] %v2268
        %2301 = vst [vmem:[#allocation2 + $0xa0] sm:$0xff] %v2269
        %2302 = vst [vmem:[#allocation2 + $0xa8] sm:$0xff] %v2270
        %2303 = vst [vmem:[#allocation2 + $0xb0] sm:$0xff] %v2271
        %2304 = vst [vmem:[#allocation2 + $0xb8] sm:$0xff] %v2272
        %2305 = vst [vmem:[#allocation2 + $0xc0] sm:$0xff] %v2273
        %2306 = vst [vmem:[#allocation2 + $0xc8] sm:$0xff] %v2274
        %2307 = vst [vmem:[#allocation2 + $0xd0] sm:$0xff] %v2275
        %2308 = vst [vmem:[#allocation2 + $0xd8] sm:$0xff] %v2276
        %2309 = vst [vmem:[#allocation2 + $0xe0] sm:$0xff] %v2277
        %2310 = vst [vmem:[#allocation2 + $0xe8] sm:$0xff] %v2278
        %2311 = vst [vmem:[#allocation2 + $0xf0] sm:$0xff] %v2279
        %2312 = vst [vmem:[#allocation2 + $0xf8] sm:$0xff] %v2280
        %v2313 = vadd.f32 %v2249, %v2250
        %v2314 = vadd.f32 %v2313, %v2251
        %v2315 = vadd.f32 %v2314, %v2252
        %v2316 = vadd.f32 %v2315, %v2253
        %v2317 = vadd.f32 %v2316, %v2254
        %v2318 = vadd.f32 %v2317, %v2255
        %v2319 = vadd.f32 %v2318, %v2256
        %v2320 = vadd.f32 %v2319, %v2257
        %v2321 = vadd.f32 %v2320, %v2258
        %v2322 = vadd.f32 %v2321, %v2259
        %v2323 = vadd.f32 %v2322, %v2260
        %v2324 = vadd.f32 %v2323, %v2261
        %v2325 = vadd.f32 %v2324, %v2262
        %v2326 = vadd.f32 %v2325, %v2263
        %v2327 = vadd.f32 %v2326, %v2264
        %v2328 = vadd.f32 %v2327, %v2265
        %v2329 = vadd.f32 %v2328, %v2266
        %v2330 = vadd.f32 %v2329, %v2267
        %v2331 = vadd.f32 %v2330, %v2268
        %v2332 = vadd.f32 %v2331, %v2269
        %v2333 = vadd.f32 %v2332, %v2270
        %v2334 = vadd.f32 %v2333, %v2271
        %v2335 = vadd.f32 %v2334, %v2272
        %v2336 = vadd.f32 %v2335, %v2273
        %v2337 = vadd.f32 %v2336, %v2274
        %v2338 = vadd.f32 %v2337, %v2275
        %v2339 = vadd.f32 %v2338, %v2276
        %v2340 = vadd.f32 %v2339, %v2277
        %v2341 = vadd.f32 %v2340, %v2278
        %v2342 = vadd.f32 %v2341, %v2279
        %v2343 = vadd.f32 %v2342, %v2280
        %v2344 = vrot.slane %v2343, 4
        %v2345 = vadd.f32 %v2343, %v2344
        %v2346 = vrot.slane %v2345, 2
        %v2347 = vadd.f32 %v2345, %v2346
        %v2348 = vrot.slane %v2347, 1
        %v2349 = vadd.f32 %v2347, %v2348
        %v2350 = vadd.f32 %v2349, 0.0
        %v2351 = vmul.f32 %v2350, 0.00390625
        %v2352 = vld [vmem:[#allocation2] sm:$0xff]
        %v2353 = vld [vmem:[#allocation2 + $0x8] sm:$0xff]
        %v2354 = vld [vmem:[#allocation2 + $0x10] sm:$0xff]
        %v2355 = vld [vmem:[#allocation2 + $0x18] sm:$0xff]
        %v2356 = vld [vmem:[#allocation2 + $0x20] sm:$0xff]
        %v2357 = vld [vmem:[#allocation2 + $0x28] sm:$0xff]
        %v2358 = vld [vmem:[#allocation2 + $0x30] sm:$0xff]
        %v2359 = vld [vmem:[#allocation2 + $0x38] sm:$0xff]
        %v2360 = vld [vmem:[#allocation2 + $0x40] sm:$0xff]
        %v2361 = vld [vmem:[#allocation2 + $0x48] sm:$0xff]
        %v2362 = vld [vmem:[#allocation2 + $0x50] sm:$0xff]
        %v2363 = vld [vmem:[#allocation2 + $0x58] sm:$0xff]
        %v2364 = vld [vmem:[#allocation2 + $0x60] sm:$0xff]
        %v2365 = vld [vmem:[#allocation2 + $0x68] sm:$0xff]
        %v2366 = vld [vmem:[#allocation2 + $0x70] sm:$0xff]
        %v2367 = vld [vmem:[#allocation2 + $0x78] sm:$0xff]
        %v2368 = vld [vmem:[#allocation2 + $0x80] sm:$0xff]
        %v2369 = vld [vmem:[#allocation2 + $0x88] sm:$0xff]
        %v2370 = vld [vmem:[#allocation2 + $0x90] sm:$0xff]
        %v2371 = vld [vmem:[#allocation2 + $0x98] sm:$0xff]
        %v2372 = vld [vmem:[#allocation2 + $0xa0] sm:$0xff]
        %v2373 = vld [vmem:[#allocation2 + $0xa8] sm:$0xff]
        %v2374 = vld [vmem:[#allocation2 + $0xb0] sm:$0xff]
        %v2375 = vld [vmem:[#allocation2 + $0xb8] sm:$0xff]
        %v2376 = vld [vmem:[#allocation2 + $0xc0] sm:$0xff]
        %v2377 = vld [vmem:[#allocation2 + $0xc8] sm:$0xff]
        %v2378 = vld [vmem:[#allocation2 + $0xd0] sm:$0xff]
        %v2379 = vld [vmem:[#allocation2 + $0xd8] sm:$0xff]
        %v2380 = vld [vmem:[#allocation2 + $0xe0] sm:$0xff]
        %v2381 = vld [vmem:[#allocation2 + $0xe8] sm:$0xff]
        %v2382 = vld [vmem:[#allocation2 + $0xf0] sm:$0xff]
        %v2383 = vld [vmem:[#allocation2 + $0xf8] sm:$0xff]
        %v2384 = vsub.f32 %v2352, %v2351
        %v2385 = vsub.f32 %v2353, %v2351
        %v2386 = vsub.f32 %v2354, %v2351
        %v2387 = vsub.f32 %v2355, %v2351
        %v2388 = vsub.f32 %v2356, %v2351
        %v2389 = vsub.f32 %v2357, %v2351
        %v2390 = vsub.f32 %v2358, %v2351
        %v2391 = vsub.f32 %v2359, %v2351
        %v2392 = vsub.f32 %v2360, %v2351
        %v2393 = vsub.f32 %v2361, %v2351
        %v2394 = vsub.f32 %v2362, %v2351
        %v2395 = vsub.f32 %v2363, %v2351
        %v2396 = vsub.f32 %v2364, %v2351
        %v2397 = vsub.f32 %v2365, %v2351
        %v2398 = vsub.f32 %v2366, %v2351
        %v2399 = vsub.f32 %v2367, %v2351
        %v2400 = vsub.f32 %v2368, %v2351
        %v2401 = vsub.f32 %v2369, %v2351
        %v2402 = vsub.f32 %v2370, %v2351
        %v2403 = vsub.f32 %v2371, %v2351
        %v2404 = vsub.f32 %v2372, %v2351
        %v2405 = vsub.f32 %v2373, %v2351
        %v2406 = vsub.f32 %v2374, %v2351
        %v2407 = vsub.f32 %v2375, %v2351
        %v2408 = vsub.f32 %v2376, %v2351
        %v2409 = vsub.f32 %v2377, %v2351
        %v2410 = vsub.f32 %v2378, %v2351
        %v2411 = vsub.f32 %v2379, %v2351
        %v2412 = vsub.f32 %v2380, %v2351
        %v2413 = vsub.f32 %v2381, %v2351
        %v2414 = vsub.f32 %v2382, %v2351
        %v2415 = vsub.f32 %v2383, %v2351
        %v2416 = vmul.f32 %v2384, %v2384
        %v2417 = vmul.f32 %v2385, %v2385
        %v2418 = vmul.f32 %v2386, %v2386
        %v2419 = vmul.f32 %v2387, %v2387
        %v2420 = vmul.f32 %v2388, %v2388
        %v2421 = vmul.f32 %v2389, %v2389
        %v2422 = vmul.f32 %v2390, %v2390
        %v2423 = vmul.f32 %v2391, %v2391
        %v2424 = vmul.f32 %v2392, %v2392
        %v2425 = vmul.f32 %v2393, %v2393
        %v2426 = vmul.f32 %v2394, %v2394
        %v2427 = vmul.f32 %v2395, %v2395
        %v2428 = vmul.f32 %v2396, %v2396
        %v2429 = vmul.f32 %v2397, %v2397
        %v2430 = vmul.f32 %v2398, %v2398
        %v2431 = vmul.f32 %v2399, %v2399
        %v2432 = vmul.f32 %v2400, %v2400
        %v2433 = vmul.f32 %v2401, %v2401
        %v2434 = vmul.f32 %v2402, %v2402
        %v2435 = vmul.f32 %v2403, %v2403
        %v2436 = vmul.f32 %v2404, %v2404
        %v2437 = vmul.f32 %v2405, %v2405
        %v2438 = vmul.f32 %v2406, %v2406
        %v2439 = vmul.f32 %v2407, %v2407
        %v2440 = vmul.f32 %v2408, %v2408
        %v2441 = vmul.f32 %v2409, %v2409
        %v2442 = vmul.f32 %v2410, %v2410
        %v2443 = vmul.f32 %v2411, %v2411
        %v2444 = vmul.f32 %v2412, %v2412
        %v2445 = vmul.f32 %v2413, %v2413
        %v2446 = vmul.f32 %v2414, %v2414
        %v2447 = vmul.f32 %v2415, %v2415
        %v2448 = vadd.f32 %v2416, %v2417
        %v2449 = vadd.f32 %v2448, %v2418
        %v2450 = vadd.f32 %v2449, %v2419
        %v2451 = vadd.f32 %v2450, %v2420
        %v2452 = vadd.f32 %v2451, %v2421
        %v2453 = vadd.f32 %v2452, %v2422
        %v2454 = vadd.f32 %v2453, %v2423
        %v2455 = vadd.f32 %v2454, %v2424
        %v2456 = vadd.f32 %v2455, %v2425
        %v2457 = vadd.f32 %v2456, %v2426
        %v2458 = vadd.f32 %v2457, %v2427
        %v2459 = vadd.f32 %v2458, %v2428
        %v2460 = vadd.f32 %v2459, %v2429
        %v2461 = vadd.f32 %v2460, %v2430
        %v2462 = vadd.f32 %v2461, %v2431
        %v2463 = vadd.f32 %v2462, %v2432
        %v2464 = vadd.f32 %v2463, %v2433
        %v2465 = vadd.f32 %v2464, %v2434
        %v2466 = vadd.f32 %v2465, %v2435
        %v2467 = vadd.f32 %v2466, %v2436
        %v2468 = vadd.f32 %v2467, %v2437
        %v2469 = vadd.f32 %v2468, %v2438
        %v2470 = vadd.f32 %v2469, %v2439
        %v2471 = vadd.f32 %v2470, %v2440
        %v2472 = vadd.f32 %v2471, %v2441
        %v2473 = vadd.f32 %v2472, %v2442
        %v2474 = vadd.f32 %v2473, %v2443
        %v2475 = vadd.f32 %v2474, %v2444
        %v2476 = vadd.f32 %v2475, %v2445
        %v2477 = vadd.f32 %v2476, %v2446
        %v2478 = vadd.f32 %v2477, %v2447
        %v2479 = vrot.slane %v2478, 4
        %v2480 = vadd.f32 %v2478, %v2479
        %v2481 = vrot.slane %v2480, 2
        %v2482 = vadd.f32 %v2480, %v2481
        %v2483 = vrot.slane %v2482, 1
        %v2484 = vadd.f32 %v2482, %v2483
        %v2485 = vadd.f32 %v2484, 0.0
        %2486 = vst [vmem:[%s196] sm:$0xff] %v2350
        %2487 = vst [vmem:[%s203] sm:$0xff] %v2485
        %s2488 = sand.u32 %s95, 1
        %s2489 = scalar_lea.sflag [#allocation4], %s2488
        %s2490 = sand.u32 %s95, 1
        %s2491 = smul.addr %s2490, 8
        %s2492 = scalar_lea.vmem [#allocation3], %s2491
        %s2493 = sand.u32 %s123, 1
        %s2494 = scalar_lea.sflag [#allocation6], %s2493
        %s2495 = sand.u32 %s123, 1
        %s2496 = smul.addr %s2495, 8
        %s2497 = scalar_lea.vmem [#allocation5], %s2496
        // Predicated region
        $region29: #{tpu_custom_call.1} parent=27 // pred_check
          %p2498 = pneg %p105
        $region30: #{tpu_custom_call.1} parent=27 // pred_check_branch
          %2500 = sbr.rel (%p2498) target = $region32
        $region31: #{tpu_custom_call.1} parent=27 // pred_region
          %2502 = vsyncadd %s2489, 0
          %s2503 = sadd.s32 %s26, %s25
          %s2504 = smul.addr %s2503, 8
          %s2505 = scalar_lea.hbm %s2, %s2504
          %s2507 = sshll.u32 %s2492, 4
          %s2508 = int_to_ptr.vmem [resolvable:$true] %s2507
          %s2509 = sshll.u32 %s2505, 4
          %s2510 = int_to_ptr.hbm [resolvable:$true] %s2509
          %2512 = dma.vmem_to_hbm [thread:$0]  %s2508, 128, %s2510, %s2489
        $region32: #{tpu_custom_call.1} parent=27 // pred_fallthru
          _
        // Predicated region
        $region33: #{tpu_custom_call.1} parent=27 // pred_check
          %p2513 = pneg %p133
        $region34: #{tpu_custom_call.1} parent=27 // pred_check_branch
          %2515 = sbr.rel (%p2513) target = $region36
        $region35: #{tpu_custom_call.1} parent=27 // pred_region
          %2517 = vsyncadd %s2494, 0
          %s2518 = sadd.s32 %s26, %s25
          %s2519 = smul.addr %s2518, 8
          %s2520 = scalar_lea.hbm %s3, %s2519
          %s2522 = sshll.u32 %s2497, 4
          %s2523 = int_to_ptr.vmem [resolvable:$true] %s2522
          %s2524 = sshll.u32 %s2520, 4
          %s2525 = int_to_ptr.hbm [resolvable:$true] %s2524
          %2527 = dma.vmem_to_hbm [thread:$0]  %s2523, 128, %s2525, %s2494
        $region36: #{tpu_custom_call.1} parent=27 // pred_fallthru
          _
      $region28: #{tpu_custom_call.1} parent=5 // pred_fallthru
        _
      %p2528 = scmp.le.s32.totalorder 2, %s16
      // Predicated region
      $region37: #{tpu_custom_call.1} parent=5 // pred_check
        %p2529 = pneg %p2528
      $region38: #{tpu_custom_call.1} parent=5 // pred_check_branch
        %2531 = sbr.rel (%p2529) target = $region40
      $region39: #{tpu_custom_call.1} parent=5 // pred_region
        %s2532 = ssub.s32 %s16, 2
        // Predicated region
        $region41: #{tpu_custom_call.1} parent=39 // pred_check
          %p2533 = pneg %p111
        $region42: #{tpu_custom_call.1} parent=39 // pred_check_branch
          %2535 = sbr.rel (%p2533) target = $region44
        $region43: #{tpu_custom_call.1} parent=39 // pred_region
          %s2536 = sand.u32 %s96, 1
          %s2537 = scalar_lea.sflag [#allocation4], %s2536
          %s2538 = sand.u32 %s96, 1
          %s2539 = smul.addr %s2538, 8
          %s2540 = scalar_lea.vmem [#allocation3], %s2539
          %2542 = dma.done %s2537, 128
        $region44: #{tpu_custom_call.1} parent=39 // pred_fallthru
          _
        // Predicated region
        $region45: #{tpu_custom_call.1} parent=39 // pred_check
          %p2543 = pneg %p139
        $region46: #{tpu_custom_call.1} parent=39 // pred_check_branch
          %2545 = sbr.rel (%p2543) target = $region48
        $region47: #{tpu_custom_call.1} parent=39 // pred_region
          %s2546 = sand.u32 %s124, 1
          %s2547 = scalar_lea.sflag [#allocation6], %s2546
          %s2548 = sand.u32 %s124, 1
          %s2549 = smul.addr %s2548, 8
          %s2550 = scalar_lea.vmem [#allocation5], %s2549
          %2552 = dma.done %s2547, 128
        $region48: #{tpu_custom_call.1} parent=39 // pred_fallthru
          _
      $region40: #{tpu_custom_call.1} parent=5 // pred_fallthru
        _
    $region6: #{tpu_custom_call.1} parent=1 // loop_footer
      %s20 = sadd.s32 1, %s16
    $region7: #{tpu_custom_call.1} parent=1 // loop_footer_branch
      %15 = sbr.rel target = $region3
    $region8: #{tpu_custom_call.1} parent=1 // loop_exit
      _
    %2553 = vsyncpa [#allocation4], 1
    %s2554 = scalar_lea.sflag [#allocation4], 1
    %2555 = vsyncpa %s2554, 1
    %2556 = vsyncpa [#allocation6], 1
    %s2557 = scalar_lea.sflag [#allocation6], 1
    %2558 = vsyncpa %s2557, 1

</llo_original>
